<compile_context>
chip_gen: v7x
topology: tpu7x:2x2x1
jax: 0.10.0
libtpu: 0.0.40
codegen_flags: <defaults>
</compile_context>

<pallas_src>
import functools

import jax
import jax.numpy as jnp
from jax import lax
from jax.experimental import pallas as pl
from jax.experimental.pallas import tpu as pltpu


def rigid_from_3_points(x):
    """JAX port of rigidFrom3Points. x: (B, 3, 3) -> (rot (B,3,3), tran (B,3))."""
    x1, x2, x3 = x[:, 0], x[:, 1], x[:, 2]
    v1 = x3 - x2
    v2 = x1 - x2
    e1 = v1 / (jnp.linalg.norm(v1, axis=-1, keepdims=True) + 0.001)
    u2 = v2 - e1 * jnp.einsum('bn,bn->b', e1, v2)[:, None]
    e2 = u2 / (jnp.linalg.norm(u2, axis=-1, keepdims=True) + 1e-8)
    e3 = jnp.cross(e1, e2)
    return jnp.stack([e1, e2, e3], axis=1), x2


def _round_up(x, m):
    return ((x + m - 1) // m) * m


def _default_tiling(tn_max, tj_max, vmem_limit_bytes):
    """Generation-specific tile caps and scoped-VMEM limit.

    Live per-step temporaries are ~3-4 * TN * TJ * 4 B (d / sq / errmap), plus
    ~0.5 MiB of double-buffered inputs and an (8, TJ) scratch.
    """
    try:
        kind = jax.devices()[0].device_kind.lower()
    except Exception:  # pragma: no cover - defensive, keep a runnable fallback
        kind = ""
    if "v7" in kind:
        # v7x: only 64 MiB physical VMEM per TensorCore.
        d_tn, d_tj, d_vmem = 1024, 1024, 40 * 1024 * 1024
    elif "v5" in kind or "v6" in kind:
        # v5e / v6e: 128 MiB physical VMEM (v5e's *scoped default* is 16 MiB,
        # so the explicit limit matters there).
        d_tn, d_tj, d_vmem = 1024, 2048, 96 * 1024 * 1024
    else:
        # Unknown generation: keep the previously-validated conservative tiles
        # and the compiler's default scoped-VMEM limit.
        d_tn, d_tj, d_vmem = 512, 512, None
    tn_max = d_tn if tn_max is None else tn_max
    tj_max = d_tj if tj_max is None else tj_max
    vmem_limit_bytes = d_vmem if vmem_limit_bytes is None else vmem_limit_bytes
    return tn_max, tj_max, vmem_limit_bytes


def _fape_kernel(lhs_ref, rhs_ref, out_ref, acc_ref, *, tn, tj, ep, epmax):
    # lhs_ref : (TN, 8)     rows = [coor, -target, -1, 0]
    # rhs_ref : (3, 8, TJ)  rhs[e] = [p_rot[j,e,:], t_rot[j,e,:], off[e,j], 0]
    # out_ref : (8, 128)    lane-dense per-N-tile partial sum (written once per i)
    # acc_ref : (8, TJ)     VMEM running-sum scratch over the J (reduction) axis
    k = pl.program_id(1)
    nk = pl.num_programs(1)

    @pl.when(k == 0)
    def _init():
        acc_ref[...] = jnp.zeros_like(acc_ref)

    lhs = lhs_ref[...]                                        # (TN, 8)
    sq = None
    for e in range(3):                                        # three K=8 MXU dots
        d = jnp.dot(lhs, rhs_ref[e],
                    preferred_element_type=jnp.float32,
                    precision=lax.Precision.HIGHEST)          # (TN, TJ)
        sq = d * d if sq is None else sq + d * d

    # No edge masking here: padded rows/lanes yield d == 0 exactly and their
    # min(sqrt(3*ep), epmax) contribution is subtracted analytically outside.
    clipped = jnp.minimum(jnp.sqrt(sq + 3.0 * ep), epmax)     # (TN, TJ)

    # Fold TN rows into 8 sublane rows with vreg-row-aligned static slices:
    # pure VPU adds, no XLU reduce, no masked stores, no scalar RMW per step.
    partial = clipped[0:8, :]
    for r in range(1, tn // 8):
        partial = partial + clipped[8 * r:8 * (r + 1), :]
    acc_ref[...] += partial                                   # (8, TJ)

    @pl.when(k == nk - 1)
    def _finalize():
        acc = acc_ref[...]                                    # (8, TJ)
        lanes = acc[:, 0:128]
        for c in range(1, tj // 128):
            lanes = lanes + acc[:, 128 * c:128 * (c + 1)]
        out_ref[...] = lanes                                  # lane-dense store


@functools.partial(
    jax.jit,
    static_argnames=("ep", "epmax", "tn_max", "tj_max", "vmem_limit_bytes"))
def _fape_loss_impl(coor, p_rot, p_tran, target, *, ep, epmax,
                    tn_max, tj_max, vmem_limit_bytes):
    coor = coor.astype(jnp.float32)
    target = target.astype(jnp.float32)
    p_rot = p_rot.astype(jnp.float32)
    p_tran = p_tran.astype(jnp.float32)

    coor_new = coor.reshape(-1, coor.shape[-1])               # (N, 3)
    target_new = target.reshape(-1, target.shape[-1])         # (N, 3)
    t_rot, t_tran = rigid_from_3_points(target)               # (J,3,3), (J,3)

    n = coor_new.shape[0]
    j = p_rot.shape[0]
    assert target_new.shape[0] == n, "reference broadcast requires equal point counts"

    # LHS (N, 8): [coor, -target, -1, 0]  (K padded 7 -> 8 for sublane alignment)
    lhs = jnp.concatenate(
        [coor_new, -target_new,
         -jnp.ones((n, 1), jnp.float32), jnp.zeros((n, 1), jnp.float32)],
        axis=1)

    # off[e, j] = p_rot[j,e,:] @ p_tran[j] - t_rot[j,e,:] @ t_tran[j]
    off = (jnp.einsum('jed,jd->ej', p_rot, p_tran, precision=lax.Precision.HIGHEST)
           - jnp.einsum('jed,jd->ej', t_rot, t_tran, precision=lax.Precision.HIGHEST))

    # RHS (3, 8, J): RHS[e] = [p_rot rows, t_rot rows, off[e], 0]
    a = jnp.transpose(p_rot, (1, 2, 0))                       # a[e,d,j] = p_rot[j,e,d]
    b = jnp.transpose(t_rot, (1, 2, 0))                       # b[e,d,j] = t_rot[j,e,d]
    rhs = jnp.concatenate(
        [a, b, off[:, None, :], jnp.zeros((3, 1, j), jnp.float32)], axis=1)

    # Tile sizes: sublane-aligned TN, lane-aligned TJ; pad arrays to the grid.
    tn = _round_up(max(8, min(tn_max, _round_up(n, 8))), 8)
    tj = _round_up(max(128, min(tj_max, _round_up(j, 128))), 128)
    n_pad = _round_up(n, tn)
    j_pad = _round_up(j, tj)
    lhs = jnp.pad(lhs, ((0, n_pad - n), (0, 0)))
    rhs = jnp.pad(rhs, ((0, 0), (0, 0), (0, j_pad - j)))

    ni = n_pad // tn
    nk = j_pad // tj

    kernel = functools.partial(_fape_kernel, tn=tn, tj=tj,
                               ep=float(ep), epmax=float(epmax))
    partials = pl.pallas_call(
        kernel,
        out_shape=jax.ShapeDtypeStruct((ni * 8, 128), jnp.float32),
        grid_spec=pltpu.PrefetchScalarGridSpec(
            num_scalar_prefetch=0,
            grid=(ni, nk),                                    # i outer, k inner
            in_specs=[
                pl.BlockSpec((tn, 8), lambda i, k: (i, 0)),   # LHS resident per i
                pl.BlockSpec((3, 8, tj), lambda i, k: (0, 0, k)),
            ],
            out_specs=pl.BlockSpec((8, 128), lambda i, k: (i, 0)),
            scratch_shapes=[pltpu.VMEM((8, tj), jnp.float32)],
        ),
        compiler_params=pltpu.CompilerParams(
            dimension_semantics=("parallel", "arbitrary"),
            vmem_limit_bytes=vmem_limit_bytes),
    )(lhs, rhs)

    # Analytic correction for padded elements (padded LHS rows / RHS lanes are
    # all-zero -> d == 0 -> each contributes exactly min(sqrt(3*ep), epmax)).
    pad_count = n_pad * j_pad - n * j
    pad_val = jnp.minimum(jnp.sqrt(jnp.float32(0.0) + 3.0 * ep),
                          jnp.float32(epmax))
    total = jnp.sum(partials) - pad_count * pad_val
    return total * (1.0 / (n * j * 10.0))                     # mean(...) / 10


def fape_loss(coor, p_rot, p_tran, target, ep=0.001, epmax=30.0,
              tn_max=None, tj_max=None, vmem_limit_bytes=None):
    tn_max, tj_max, vmem_limit_bytes = _default_tiling(
        tn_max, tj_max, vmem_limit_bytes)
    return _fape_loss_impl(
        coor, p_rot, p_tran, target, ep=float(ep), epmax=float(epmax),
        tn_max=int(tn_max), tj_max=int(tj_max),
        vmem_limit_bytes=None if vmem_limit_bytes is None else int(vmem_limit_bytes))


def fape_loss_ref(coor, p_rot, p_tran, target, ep=0.001, epmax=30.0):
    """Pure-JAX transcription of the PyTorch forward (for verification)."""
    coor_new = coor.reshape(-1, coor.shape[-1])
    pred = coor_new[:, None, :] - p_tran[None, :, :]
    pred = jnp.einsum('ijd,jde->ije', pred, jnp.swapaxes(p_rot, -1, -2),
                      precision=lax.Precision.HIGHEST)
    target_new = target.reshape(-1, target.shape[-1])
    t_rot, t_tran = rigid_from_3_points(target)
    tx = target_new[:, None, :] - t_tran[None, :, :]
    tx = jnp.einsum('ijd,jde->ije', tx, jnp.swapaxes(t_rot, -1, -2),
                    precision=lax.Precision.HIGHEST)
    errmap = jnp.sqrt(((pred - tx) ** 2 + ep).sum(axis=-1))
    return jnp.mean(jnp.minimum(errmap, epmax)) / 10.0


if __name__ == "__main__":
    key = jax.random.PRNGKey(0)

    cases = [
        # (B, tn_max, tj_max)
        (8, None, None),     # tiny single tile, heavy lane padding on J
        (200, None, None),   # single large tile under the auto (big-tile) caps
        (200, 256, 128),     # forced 3x2 grid: parallel-i partial outputs,
                             # k accumulation, and the analytic pad correction
    ]
    for (B, tn_max, tj_max) in cases:
        k1, k2 = jax.random.split(jax.random.fold_in(key, B))
        target = 2.0 * jax.random.normal(k1, (B, 3, 3), dtype=jnp.float32)
        coor = target + 0.1 * jax.random.normal(k2, (B, 3, 3), dtype=jnp.float32)
        p_rot, p_tran = rigid_from_3_points(coor)

        loss = jax.block_until_ready(
            fape_loss(coor, p_rot, p_tran, target, tn_max=tn_max, tj_max=tj_max))
        ref = fape_loss_ref(coor, p_rot, p_tran, target)
        tol = 1e-4 * max(1.0, abs(float(ref)))
        assert abs(float(loss) - float(ref)) < tol, \
            (B, tn_max, tj_max, float(loss), float(ref))

    print("KERNEL_OK")
</pallas_src>

<mosaic_0001>
module attributes {stable_mosaic.version = 11 : i64} {
  func.func @_fape_kernel(%arg0: i32, %arg1: i32, %arg2: memref<24x8xf32, #tpu.memory_space<vmem>>, %arg3: memref<3x8x128xf32, #tpu.memory_space<vmem>>, %arg4: memref<8x128xf32, #tpu.memory_space<vmem>>, %arg5: memref<8x128xf32, #tpu.memory_space<vmem>>) attributes {dimension_semantics = [#tpu.dimension_semantics<parallel>, #tpu.dimension_semantics<arbitrary>], iteration_bounds = array<i64: 1, 1>, scalar_prefetch = 0 : i64, scratch_operands = 1 : i64, tpu.core_type = #tpu.core_type<tc>, window_params = [{transform_indices = @transform_0, window_bounds = array<i64: 24, 8>}, {transform_indices = @transform_1, window_bounds = array<i64: 3, 8, 128>}, {transform_indices = @transform_2, window_bounds = array<i64: 8, 128>}]} {
    %c0_i32 = arith.constant 0 : i32
    %0 = arith.cmpi eq, %arg1, %c0_i32 : i32
    %1 = arith.extui %0 : i1 to i32
    %c0_i32_0 = arith.constant 0 : i32
    %2 = arith.cmpi ne, %1, %c0_i32_0 : i32
    scf.if %2 {
      %cst_19 = arith.constant 0.000000e+00 : f32
      %34 = vector.broadcast %cst_19 : f32 to vector<8x128xf32>
      %c0_20 = arith.constant 0 : index
      %c0_21 = arith.constant 0 : index
      %35 = vector.load %arg5[%c0_20, %c0_21] : memref<8x128xf32, #tpu.memory_space<vmem>>, vector<8x128xf32>
      tpu.vector_store %arg5[%c0_20, %c0_21], %34 {strides = array<i32>} : memref<8x128xf32, #tpu.memory_space<vmem>>, vector<8x128xf32>,
    } else {
    }
    %c0 = arith.constant 0 : index
    %c0_1 = arith.constant 0 : index
    %3 = vector.load %arg2[%c0, %c0_1] : memref<24x8xf32, #tpu.memory_space<vmem>>, vector<24x8xf32>
    %c0_2 = arith.constant 0 : index
    %c0_3 = arith.constant 0 : index
    %c0_4 = arith.constant 0 : index
    %4 = vector.load %arg3[%c0_2, %c0_3, %c0_4] : memref<3x8x128xf32, #tpu.memory_space<vmem>>, vector<1x8x128xf32>
    %5 = vector.shape_cast %4 : vector<1x8x128xf32> to vector<8x128xf32>
    %cst = arith.constant dense<0.000000e+00> : vector<24x128xf32>
    %6 = tpu.matmul %3, %5, %cst {dimension_numbers = #tpu.dot_dimension_numbers<[1], [0], [0], [1], [0, 0, 1, 1], [], []>, precision = #tpu.contract_precision<fp32>} : vector<24x8xf32>, vector<8x128xf32>, vector<24x128xf32> -> vector<24x128xf32>
    %7 = arith.mulf %6, %6 : vector<24x128xf32>
    %c1 = arith.constant 1 : index
    %c0_5 = arith.constant 0 : index
    %c0_6 = arith.constant 0 : index
    %8 = vector.load %arg3[%c1, %c0_5, %c0_6] : memref<3x8x128xf32, #tpu.memory_space<vmem>>, vector<1x8x128xf32>
    %9 = vector.shape_cast %8 : vector<1x8x128xf32> to vector<8x128xf32>
    %cst_7 = arith.constant dense<0.000000e+00> : vector<24x128xf32>
    %10 = tpu.matmul %3, %9, %cst_7 {dimension_numbers = #tpu.dot_dimension_numbers<[1], [0], [0], [1], [0, 0, 1, 1], [], []>, precision = #tpu.contract_precision<fp32>} : vector<24x8xf32>, vector<8x128xf32>, vector<24x128xf32> -> vector<24x128xf32>
    %11 = arith.mulf %10, %10 : vector<24x128xf32>
    %12 = arith.addf %7, %11 : vector<24x128xf32>
    %c2 = arith.constant 2 : index
    %c0_8 = arith.constant 0 : index
    %c0_9 = arith.constant 0 : index
    %13 = vector.load %arg3[%c2, %c0_8, %c0_9] : memref<3x8x128xf32, #tpu.memory_space<vmem>>, vector<1x8x128xf32>
    %14 = vector.shape_cast %13 : vector<1x8x128xf32> to vector<8x128xf32>
    %cst_10 = arith.constant dense<0.000000e+00> : vector<24x128xf32>
    %15 = tpu.matmul %3, %14, %cst_10 {dimension_numbers = #tpu.dot_dimension_numbers<[1], [0], [0], [1], [0, 0, 1, 1], [], []>, precision = #tpu.contract_precision<fp32>} : vector<24x8xf32>, vector<8x128xf32>, vector<24x128xf32> -> vector<24x128xf32>
    %16 = arith.mulf %15, %15 : vector<24x128xf32>
    %17 = arith.addf %12, %16 : vector<24x128xf32>
    %cst_11 = arith.constant 3.000000e-03 : f32
    %18 = vector.broadcast %cst_11 : f32 to vector<24x128xf32>
    %19 = arith.addf %17, %18 : vector<24x128xf32>
    %20 = math.sqrt %19 : vector<24x128xf32>
    %cst_12 = arith.constant 3.000000e+01 : f32
    %21 = vector.broadcast %cst_12 : f32 to vector<24x128xf32>
    %22 = arith.minimumf %20, %21 : vector<24x128xf32>
    %23 = vector.extract_strided_slice %22 {offsets = [0, 0], sizes = [8, 128], strides = [1, 1]} : vector<24x128xf32> to vector<8x128xf32>
    %24 = vector.extract_strided_slice %22 {offsets = [8, 0], sizes = [8, 128], strides = [1, 1]} : vector<24x128xf32> to vector<8x128xf32>
    %25 = arith.addf %23, %24 : vector<8x128xf32>
    %26 = vector.extract_strided_slice %22 {offsets = [16, 0], sizes = [8, 128], strides = [1, 1]} : vector<24x128xf32> to vector<8x128xf32>
    %27 = arith.addf %25, %26 : vector<8x128xf32>
    %c0_13 = arith.constant 0 : index
    %c0_14 = arith.constant 0 : index
    %28 = vector.load %arg5[%c0_13, %c0_14] : memref<8x128xf32, #tpu.memory_space<vmem>>, vector<8x128xf32>
    %29 = arith.addf %28, %27 : vector<8x128xf32>
    %c0_15 = arith.constant 0 : index
    %c0_16 = arith.constant 0 : index
    %30 = vector.load %arg5[%c0_15, %c0_16] : memref<8x128xf32, #tpu.memory_space<vmem>>, vector<8x128xf32>
    tpu.vector_store %arg5[%c0_15, %c0_16], %29 {strides = array<i32>} : memref<8x128xf32, #tpu.memory_space<vmem>>, vector<8x128xf32>,
    %c0_i32_17 = arith.constant 0 : i32
    %31 = arith.cmpi eq, %arg1, %c0_i32_17 : i32
    %32 = arith.extui %31 : i1 to i32
    %c0_i32_18 = arith.constant 0 : i32
    %33 = arith.cmpi ne, %32, %c0_i32_18 : i32
    scf.if %33 {
      %c0_19 = arith.constant 0 : index
      %c0_20 = arith.constant 0 : index
      %34 = vector.load %arg5[%c0_19, %c0_20] : memref<8x128xf32, #tpu.memory_space<vmem>>, vector<8x128xf32>
      %c0_21 = arith.constant 0 : index
      %c0_22 = arith.constant 0 : index
      %35 = vector.load %arg4[%c0_21, %c0_22] : memref<8x128xf32, #tpu.memory_space<vmem>>, vector<8x128xf32>
      tpu.vector_store %arg4[%c0_21, %c0_22], %34 {strides = array<i32>} : memref<8x128xf32, #tpu.memory_space<vmem>>, vector<8x128xf32>,
    } else {
    }
    return
  }
  func.func @transform_0(%arg0: i32, %arg1: i32) -> (i32, i32) {
    %c0_i32 = arith.constant 0 : i32
    %c0_i32_0 = arith.constant 0 : i32
    return %arg0, %c0_i32 : i32, i32
  }
  func.func @transform_1(%arg0: i32, %arg1: i32) -> (i32, i32, i32) {
    %c0_i32 = arith.constant 0 : i32
    %c0_i32_0 = arith.constant 0 : i32
    %c0_i32_1 = arith.constant 0 : i32
    return %c0_i32, %c0_i32_0, %arg1 : i32, i32, i32
  }
  func.func @transform_2(%arg0: i32, %arg1: i32) -> (i32, i32) {
    %c0_i32 = arith.constant 0 : i32
    %c0_i32_0 = arith.constant 0 : i32
    return %arg0, %c0_i32 : i32, i32
  }
}

</mosaic_0001>

<llo_original>
// kernel: neg.0
$region0: #{neg.0}
  #allocation0 [shape = 's32[1]{0}', space=sflag, size = 0x4, scoped, tag = 'scoped memory for neg.0']
  %s0 = inlined_call_operand.vmem [shape: f32[8,3,3], index: 0, kind: input, shape index: {}]
  %s1 = inlined_call_operand.vmem [shape: f32[8,3,3], index: 1, kind: output, shape index: {}]
  %v2 = vld [vmem:[%s0] sm:$0x7]
  %3 = xla_tuple %v2
  %4 = xla_tuple %3
  %v5 = vxor.u32 %v2, 2147483648
  %6 = xla_tuple %v5
  %7 = vst [vmem:[%s1] sm:$0xf] %v5
  %s8 = scalar_lea.vmem %s0, 4
  %v9 = vld [vmem:[%s8] sm:$0x7]
  %10 = xla_tuple %v9
  %11 = xla_tuple %10
  %v12 = vxor.u32 %v9, 2147483648
  %13 = xla_tuple %v12
  %s14 = scalar_lea.vmem %s1, 4
  %15 = vst [vmem:[%s14] sm:$0xf] %v12
  %s16 = scalar_lea.vmem %s0, 8
  %v17 = vld [vmem:[%s16] sm:$0x7]
  %18 = xla_tuple %v17
  %19 = xla_tuple %18
  %v20 = vxor.u32 %v17, 2147483648
  %21 = xla_tuple %v20
  %s22 = scalar_lea.vmem %s1, 8
  %23 = vst [vmem:[%s22] sm:$0xf] %v20

// kernel: _fape_loss_impl.1
$region0: #{_fape_loss_impl.1}
  #allocation0 [shape = 'u32[]', space=smem, size = 0x4, offset = 0x4, fixed_abs, tag = 'smem constant byte address 0x4 - core index']
  #allocation1 [shape = 'u32[144,128]{1,0:T(1,128)}', space=vmem, size = 0x12000, scoped, tag = 'internal scratch']
  #allocation2 [shape = 'f32[8,128]{1,0:T(8,128)}', space=vmem, size = 0x1000, scoped, tag = 'scratch operand']
  %s0 = inlined_call_operand.vmem [shape: f32[24,8], index: 0, kind: input, shape index: {}]
  %s1 = inlined_call_operand.vmem [shape: f32[3,8,128], index: 1, kind: input, shape index: {}]
  %s2 = inlined_call_operand.vmem [shape: f32[8,128], index: 2, kind: output, shape index: {}]
  %s3 = sld [smem:[#allocation0]]
  $region26: #{_fape_loss_impl.1} parent=0
    _
  %s5 = ssub.s32 1, %s3
  %s6 = scalar_select 0, %s5, %s3
  // Predicated region
  $region2: #{_fape_loss_impl.1} parent=0 // pred_check
    _
  $region3: #{_fape_loss_impl.1} parent=0 // pred_check_branch
    %8 = sbr.rel (0) target = $region5
  $region4: #{_fape_loss_impl.1} parent=0 // pred_region
    _
  $region5: #{_fape_loss_impl.1} parent=0 // pred_fallthru
    _
  // Predicated region
  $region6: #{_fape_loss_impl.1} parent=0 // pred_check
    _
  $region7: #{_fape_loss_impl.1} parent=0 // pred_check_branch
    %10 = sbr.rel (0) target = $region9
  $region8: #{_fape_loss_impl.1} parent=0 // pred_region
    _
  $region9: #{_fape_loss_impl.1} parent=0 // pred_fallthru
    _
  %p11 = scmp.eq.s32.totalorder 0, 0
  // Predicated region
  $region10: #{_fape_loss_impl.1} parent=0 // pred_check
    %p12 = pneg %p11
  $region11: #{_fape_loss_impl.1} parent=0 // pred_check_branch
    %14 = sbr.rel (%p12) target = $region13
  $region12: #{_fape_loss_impl.1} parent=0 // pred_region
    %15 = vst [vmem:[#allocation2] sm:$0xff] 0.0
  $region13: #{_fape_loss_impl.1} parent=0 // pred_fallthru
    _
  %v16 = vld [vmem:[%s0] sm:$0xff]
  %v17 = vld [vmem:[%s0 + $0x8] sm:$0xff]
  %v18 = vld [vmem:[%s0 + $0x10] sm:$0xff]
  %v19 = vld [vmem:[%s1] sm:$0xff]
  %vm20 = vcmask 64512
  %v22 = vsel %vm20, %v16, 0
  %v25 = vsel %vm20, %v17, 0
  %v28 = vsel %vm20, %v18, 0
  %30 = vmatprep.subr.mxu0 0.0
  %v31 = vand.u32 %v19, 4294901760
  %32 = vmatpush1.msra.mxu0 %v31
  %33 = vmatprep.subr.mxu0 0.0
  %34 = vmatpush1.msra.mxu0 0.0
  %35 = vmatprep.subr.mxu0 0.0
  %36 = vmatpush1.msra.mxu0 0.0
  %37 = vmatprep.subr.mxu0 0.0
  %38 = vmatpush1.msra.mxu0 0.0
  %39 = vmatprep.subr.mxu0 0.0
  %40 = vmatpush1.msra.mxu0 0.0
  %41 = vmatprep.subr.mxu0 0.0
  %42 = vmatpush1.msra.mxu0 0.0
  %43 = vmatprep.subr.mxu0 0.0
  %44 = vmatpush1.msra.mxu0 0.0
  %45 = vmatprep.subr.mxu0 0.0
  %46 = vmatpush1.msra.mxu0 0.0
  %47 = vmatprep.subr.mxu0 0.0
  %48 = vmatpush1.msra.mxu0 0.0
  %49 = vmatprep.subr.mxu0 0.0
  %50 = vmatpush1.msra.mxu0 0.0
  %51 = vmatprep.subr.mxu0 0.0
  %52 = vmatpush1.msra.mxu0 0.0
  %53 = vmatprep.subr.mxu0 0.0
  %54 = vmatpush1.msra.mxu0 0.0
  %55 = vmatprep.subr.mxu0 0.0
  %56 = vmatpush1.msra.mxu0 0.0
  %57 = vmatprep.subr.mxu0 0.0
  %58 = vmatpush1.msra.mxu0 0.0
  %59 = vmatprep.subr.mxu0 0.0
  %60 = vmatpush1.msra.mxu0 0.0
  %61 = vmatprep.subr.mxu0 0.0
  %62 = vmatpush1.msra.mxu0 0.0
  %63 = vmatprep.subr.mxu0 0.0
  %64 = vmatpush1.msra.mxu0 0.0
  %65 = vmatprep.subr.mxu0 0.0
  %66 = vmatpush1.msra.mxu0 0.0
  %67 = vmatprep.subr.mxu0 0.0
  %68 = vmatpush1.msra.mxu0 0.0
  %69 = vmatprep.subr.mxu0 0.0
  %70 = vmatpush1.msra.mxu0 0.0
  %71 = vmatprep.subr.mxu0 0.0
  %72 = vmatpush1.msra.mxu0 0.0
  %73 = vmatprep.subr.mxu0 0.0
  %74 = vmatpush1.msra.mxu0 0.0
  %75 = vmatprep.subr.mxu0 0.0
  %76 = vmatpush1.msra.mxu0 0.0
  %77 = vmatprep.subr.mxu0 0.0
  %78 = vmatpush1.msra.mxu0 0.0
  %79 = vmatprep.subr.mxu0 0.0
  %80 = vmatpush1.msra.mxu0 0.0
  %81 = vmatprep.subr.mxu0 0.0
  %82 = vmatpush1.msra.mxu0 0.0
  %83 = vmatprep.subr.mxu0 0.0
  %84 = vmatpush1.msra.mxu0 0.0
  %85 = vmatprep.subr.mxu0 0.0
  %86 = vmatpush1.msra.mxu0 0.0
  %87 = vmatprep.subr.mxu0 0.0
  %88 = vmatpush1.msra.mxu0 0.0
  %89 = vmatprep.subr.mxu0 0.0
  %90 = vmatpush1.msra.mxu0 0.0
  %91 = vmatprep.subr.mxu0 0.0
  %92 = vmatpush1.msra.mxu0 0.0
  %93 = vmatprep.subr.mxu0 0.0
  %94 = vmatpush1.msra.mxu0 0.0
  %95 = vmatprep.mubr.f32.mxu0 0.0
  %v96 = vand.u32 %v22, 4294901760
  %v97 = vsub.f32 %v22, %v96
  %v98 = vand.u32 %v97, 4294901760
  %v99 = vsub.f32 %v97, %v98
  %v100 = vand.u32 %v99, 4294901760
  %101 = vmatmul.mubr.f32.gmra.mrb[0].mxu0 %v100
  %v102 = vpop.f32.mrb[0].mxu0
  %v103 = vadd.f32 0.0, %v102
  %v104 = vpop.f32.mrb[0].mxu0
  %105 = vmatprep.mubr.f32.mxu0 0.0
  %v106 = vand.u32 %v25, 4294901760
  %v107 = vsub.f32 %v25, %v106
  %v108 = vand.u32 %v107, 4294901760
  %v109 = vsub.f32 %v107, %v108
  %v110 = vand.u32 %v109, 4294901760
  %111 = vmatmul.mubr.f32.gmra.mrb[0].mxu0 %v110
  %v112 = vpop.f32.mrb[0].mxu0
  %v113 = vadd.f32 0.0, %v112
  %v114 = vpop.f32.mrb[0].mxu0
  %115 = vmatprep.mubr.f32.mxu0 0.0
  %v116 = vand.u32 %v28, 4294901760
  %v117 = vsub.f32 %v28, %v116
  %v118 = vand.u32 %v117, 4294901760
  %v119 = vsub.f32 %v117, %v118
  %v120 = vand.u32 %v119, 4294901760
  %121 = vmatmul.mubr.f32.gmra.mrb[0].mxu0 %v120
  %v122 = vpop.f32.mrb[0].mxu0
  %v123 = vadd.f32 0.0, %v122
  %v124 = vpop.f32.mrb[0].mxu0
  %125 = vdwg.mxu0
  %126 = vmatprep.subr.mxu0 0.0
  %v127 = vand.u32 %v19, 4294901760
  %v128 = vsub.f32 %v19, %v127
  %v129 = vand.u32 %v128, 4294901760
  %v130 = vsub.f32 %v128, %v129
  %v131 = vand.u32 %v130, 4294901760
  %132 = vmatpush1.msra.mxu0 %v131
  %133 = vmatprep.subr.mxu0 0.0
  %134 = vmatpush1.msra.mxu0 0.0
  %135 = vmatprep.subr.mxu0 0.0
  %136 = vmatpush1.msra.mxu0 0.0
  %137 = vmatprep.subr.mxu0 0.0
  %138 = vmatpush1.msra.mxu0 0.0
  %139 = vmatprep.subr.mxu0 0.0
  %140 = vmatpush1.msra.mxu0 0.0
  %141 = vmatprep.subr.mxu0 0.0
  %142 = vmatpush1.msra.mxu0 0.0
  %143 = vmatprep.subr.mxu0 0.0
  %144 = vmatpush1.msra.mxu0 0.0
  %145 = vmatprep.subr.mxu0 0.0
  %146 = vmatpush1.msra.mxu0 0.0
  %147 = vmatprep.subr.mxu0 0.0
  %148 = vmatpush1.msra.mxu0 0.0
  %149 = vmatprep.subr.mxu0 0.0
  %150 = vmatpush1.msra.mxu0 0.0
  %151 = vmatprep.subr.mxu0 0.0
  %152 = vmatpush1.msra.mxu0 0.0
  %153 = vmatprep.subr.mxu0 0.0
  %154 = vmatpush1.msra.mxu0 0.0
  %155 = vmatprep.subr.mxu0 0.0
  %156 = vmatpush1.msra.mxu0 0.0
  %157 = vmatprep.subr.mxu0 0.0
  %158 = vmatpush1.msra.mxu0 0.0
  %159 = vmatprep.subr.mxu0 0.0
  %160 = vmatpush1.msra.mxu0 0.0
  %161 = vmatprep.subr.mxu0 0.0
  %162 = vmatpush1.msra.mxu0 0.0
  %163 = vmatprep.subr.mxu0 0.0
  %164 = vmatpush1.msra.mxu0 0.0
  %165 = vmatprep.subr.mxu0 0.0
  %166 = vmatpush1.msra.mxu0 0.0
  %167 = vmatprep.subr.mxu0 0.0
  %168 = vmatpush1.msra.mxu0 0.0
  %169 = vmatprep.subr.mxu0 0.0
  %170 = vmatpush1.msra.mxu0 0.0
  %171 = vmatprep.subr.mxu0 0.0
  %172 = vmatpush1.msra.mxu0 0.0
  %173 = vmatprep.subr.mxu0 0.0
  %174 = vmatpush1.msra.mxu0 0.0
  %175 = vmatprep.subr.mxu0 0.0
  %176 = vmatpush1.msra.mxu0 0.0
  %177 = vmatprep.subr.mxu0 0.0
  %178 = vmatpush1.msra.mxu0 0.0
  %179 = vmatprep.subr.mxu0 0.0
  %180 = vmatpush1.msra.mxu0 0.0
  %181 = vmatprep.subr.mxu0 0.0
  %182 = vmatpush1.msra.mxu0 0.0
  %183 = vmatprep.subr.mxu0 0.0
  %184 = vmatpush1.msra.mxu0 0.0
  %185 = vmatprep.subr.mxu0 0.0
  %186 = vmatpush1.msra.mxu0 0.0
  %187 = vmatprep.subr.mxu0 0.0
  %188 = vmatpush1.msra.mxu0 0.0
  %189 = vmatprep.subr.mxu0 0.0
  %190 = vmatpush1.msra.mxu0 0.0
  %191 = vmatprep.subr.mxu0 0.0
  %192 = vmatpush1.msra.mxu0 0.0
  %193 = vmatprep.subr.mxu0 0.0
  %194 = vmatpush1.msra.mxu0 0.0
  %195 = vmatprep.mubr.f32.mxu0 0.0
  %v196 = vand.u32 %v22, 4294901760
  %197 = vmatmul.mubr.f32.gmra.mrb[0].mxu0 %v196
  %v198 = vpop.f32.mrb[0].mxu0
  %v199 = vadd.f32 %v103, %v198
  %v200 = vpop.f32.mrb[0].mxu0
  %201 = vmatprep.mubr.f32.mxu0 0.0
  %v202 = vand.u32 %v25, 4294901760
  %203 = vmatmul.mubr.f32.gmra.mrb[0].mxu0 %v202
  %v204 = vpop.f32.mrb[0].mxu0
  %v205 = vadd.f32 %v113, %v204
  %v206 = vpop.f32.mrb[0].mxu0
  %207 = vmatprep.mubr.f32.mxu0 0.0
  %v208 = vand.u32 %v28, 4294901760
  %209 = vmatmul.mubr.f32.gmra.mrb[0].mxu0 %v208
  %v210 = vpop.f32.mrb[0].mxu0
  %v211 = vadd.f32 %v123, %v210
  %v212 = vpop.f32.mrb[0].mxu0
  %213 = vdwg.mxu0
  %214 = vmatprep.subr.mxu0 0.0
  %v215 = vand.u32 %v19, 4294901760
  %v216 = vsub.f32 %v19, %v215
  %217 = vmatpush1.msra.mxu0 %v216
  %218 = vmatprep.subr.mxu0 0.0
  %219 = vmatpush1.msra.mxu0 0.0
  %220 = vmatprep.subr.mxu0 0.0
  %221 = vmatpush1.msra.mxu0 0.0
  %222 = vmatprep.subr.mxu0 0.0
  %223 = vmatpush1.msra.mxu0 0.0
  %224 = vmatprep.subr.mxu0 0.0
  %225 = vmatpush1.msra.mxu0 0.0
  %226 = vmatprep.subr.mxu0 0.0
  %227 = vmatpush1.msra.mxu0 0.0
  %228 = vmatprep.subr.mxu0 0.0
  %229 = vmatpush1.msra.mxu0 0.0
  %230 = vmatprep.subr.mxu0 0.0
  %231 = vmatpush1.msra.mxu0 0.0
  %232 = vmatprep.subr.mxu0 0.0
  %233 = vmatpush1.msra.mxu0 0.0
  %234 = vmatprep.subr.mxu0 0.0
  %235 = vmatpush1.msra.mxu0 0.0
  %236 = vmatprep.subr.mxu0 0.0
  %237 = vmatpush1.msra.mxu0 0.0
  %238 = vmatprep.subr.mxu0 0.0
  %239 = vmatpush1.msra.mxu0 0.0
  %240 = vmatprep.subr.mxu0 0.0
  %241 = vmatpush1.msra.mxu0 0.0
  %242 = vmatprep.subr.mxu0 0.0
  %243 = vmatpush1.msra.mxu0 0.0
  %244 = vmatprep.subr.mxu0 0.0
  %245 = vmatpush1.msra.mxu0 0.0
  %246 = vmatprep.subr.mxu0 0.0
  %247 = vmatpush1.msra.mxu0 0.0
  %248 = vmatprep.subr.mxu0 0.0
  %249 = vmatpush1.msra.mxu0 0.0
  %250 = vmatprep.subr.mxu0 0.0
  %251 = vmatpush1.msra.mxu0 0.0
  %252 = vmatprep.subr.mxu0 0.0
  %253 = vmatpush1.msra.mxu0 0.0
  %254 = vmatprep.subr.mxu0 0.0
  %255 = vmatpush1.msra.mxu0 0.0
  %256 = vmatprep.subr.mxu0 0.0
  %257 = vmatpush1.msra.mxu0 0.0
  %258 = vmatprep.subr.mxu0 0.0
  %259 = vmatpush1.msra.mxu0 0.0
  %260 = vmatprep.subr.mxu0 0.0
  %261 = vmatpush1.msra.mxu0 0.0
  %262 = vmatprep.subr.mxu0 0.0
  %263 = vmatpush1.msra.mxu0 0.0
  %264 = vmatprep.subr.mxu0 0.0
  %265 = vmatpush1.msra.mxu0 0.0
  %266 = vmatprep.subr.mxu0 0.0
  %267 = vmatpush1.msra.mxu0 0.0
  %268 = vmatprep.subr.mxu0 0.0
  %269 = vmatpush1.msra.mxu0 0.0
  %270 = vmatprep.subr.mxu0 0.0
  %271 = vmatpush1.msra.mxu0 0.0
  %272 = vmatprep.subr.mxu0 0.0
  %273 = vmatpush1.msra.mxu0 0.0
  %274 = vmatprep.subr.mxu0 0.0
  %275 = vmatpush1.msra.mxu0 0.0
  %276 = vmatprep.subr.mxu0 0.0
  %277 = vmatpush1.msra.mxu0 0.0
  %278 = vmatprep.subr.mxu0 0.0
  %279 = vmatpush1.msra.mxu0 0.0
  %280 = vmatprep.mubr.f32.mxu0 0.0
  %v281 = vand.u32 %v22, 4294901760
  %v282 = vsub.f32 %v22, %v281
  %283 = vmatmul.mubr.f32.gmra.mrb[0].mxu0 %v282
  %v284 = vpop.f32.mrb[0].mxu0
  %v285 = vadd.f32 %v199, %v284
  %v286 = vpop.f32.mrb[0].mxu0
  %287 = vmatprep.mubr.f32.mxu0 0.0
  %v288 = vand.u32 %v25, 4294901760
  %v289 = vsub.f32 %v25, %v288
  %290 = vmatmul.mubr.f32.gmra.mrb[0].mxu0 %v289
  %v291 = vpop.f32.mrb[0].mxu0
  %v292 = vadd.f32 %v205, %v291
  %v293 = vpop.f32.mrb[0].mxu0
  %294 = vmatprep.mubr.f32.mxu0 0.0
  %v295 = vand.u32 %v28, 4294901760
  %v296 = vsub.f32 %v28, %v295
  %297 = vmatmul.mubr.f32.gmra.mrb[0].mxu0 %v296
  %v298 = vpop.f32.mrb[0].mxu0
  %v299 = vadd.f32 %v211, %v298
  %v300 = vpop.f32.mrb[0].mxu0
  %301 = vdwg.mxu0
  %302 = vmatprep.subr.mxu0 0.0
  %v303 = vand.u32 %v19, 4294901760
  %304 = vmatpush1.msra.mxu0 %v303
  %305 = vmatprep.subr.mxu0 0.0
  %306 = vmatpush1.msra.mxu0 0.0
  %307 = vmatprep.subr.mxu0 0.0
  %308 = vmatpush1.msra.mxu0 0.0
  %309 = vmatprep.subr.mxu0 0.0
  %310 = vmatpush1.msra.mxu0 0.0
  %311 = vmatprep.subr.mxu0 0.0
  %312 = vmatpush1.msra.mxu0 0.0
  %313 = vmatprep.subr.mxu0 0.0
  %314 = vmatpush1.msra.mxu0 0.0
  %315 = vmatprep.subr.mxu0 0.0
  %316 = vmatpush1.msra.mxu0 0.0
  %317 = vmatprep.subr.mxu0 0.0
  %318 = vmatpush1.msra.mxu0 0.0
  %319 = vmatprep.subr.mxu0 0.0
  %320 = vmatpush1.msra.mxu0 0.0
  %321 = vmatprep.subr.mxu0 0.0
  %322 = vmatpush1.msra.mxu0 0.0
  %323 = vmatprep.subr.mxu0 0.0
  %324 = vmatpush1.msra.mxu0 0.0
  %325 = vmatprep.subr.mxu0 0.0
  %326 = vmatpush1.msra.mxu0 0.0
  %327 = vmatprep.subr.mxu0 0.0
  %328 = vmatpush1.msra.mxu0 0.0
  %329 = vmatprep.subr.mxu0 0.0
  %330 = vmatpush1.msra.mxu0 0.0
  %331 = vmatprep.subr.mxu0 0.0
  %332 = vmatpush1.msra.mxu0 0.0
  %333 = vmatprep.subr.mxu0 0.0
  %334 = vmatpush1.msra.mxu0 0.0
  %335 = vmatprep.subr.mxu0 0.0
  %336 = vmatpush1.msra.mxu0 0.0
  %337 = vmatprep.subr.mxu0 0.0
  %338 = vmatpush1.msra.mxu0 0.0
  %339 = vmatprep.subr.mxu0 0.0
  %340 = vmatpush1.msra.mxu0 0.0
  %341 = vmatprep.subr.mxu0 0.0
  %342 = vmatpush1.msra.mxu0 0.0
  %343 = vmatprep.subr.mxu0 0.0
  %344 = vmatpush1.msra.mxu0 0.0
  %345 = vmatprep.subr.mxu0 0.0
  %346 = vmatpush1.msra.mxu0 0.0
  %347 = vmatprep.subr.mxu0 0.0
  %348 = vmatpush1.msra.mxu0 0.0
  %349 = vmatprep.subr.mxu0 0.0
  %350 = vmatpush1.msra.mxu0 0.0
  %351 = vmatprep.subr.mxu0 0.0
  %352 = vmatpush1.msra.mxu0 0.0
  %353 = vmatprep.subr.mxu0 0.0
  %354 = vmatpush1.msra.mxu0 0.0
  %355 = vmatprep.subr.mxu0 0.0
  %356 = vmatpush1.msra.mxu0 0.0
  %357 = vmatprep.subr.mxu0 0.0
  %358 = vmatpush1.msra.mxu0 0.0
  %359 = vmatprep.subr.mxu0 0.0
  %360 = vmatpush1.msra.mxu0 0.0
  %361 = vmatprep.subr.mxu0 0.0
  %362 = vmatpush1.msra.mxu0 0.0
  %363 = vmatprep.subr.mxu0 0.0
  %364 = vmatpush1.msra.mxu0 0.0
  %365 = vmatprep.subr.mxu0 0.0
  %366 = vmatpush1.msra.mxu0 0.0
  %367 = vmatprep.mubr.f32.mxu0 0.0
  %v368 = vand.u32 %v22, 4294901760
  %v369 = vsub.f32 %v22, %v368
  %v370 = vand.u32 %v369, 4294901760
  %371 = vmatmul.mubr.f32.gmra.mrb[0].mxu0 %v370
  %v372 = vpop.f32.mrb[0].mxu0
  %v373 = vadd.f32 %v285, %v372
  %v374 = vpop.f32.mrb[0].mxu0
  %375 = vmatprep.mubr.f32.mxu0 0.0
  %v376 = vand.u32 %v25, 4294901760
  %v377 = vsub.f32 %v25, %v376
  %v378 = vand.u32 %v377, 4294901760
  %379 = vmatmul.mubr.f32.gmra.mrb[0].mxu0 %v378
  %v380 = vpop.f32.mrb[0].mxu0
  %v381 = vadd.f32 %v292, %v380
  %v382 = vpop.f32.mrb[0].mxu0
  %383 = vmatprep.mubr.f32.mxu0 0.0
  %v384 = vand.u32 %v28, 4294901760
  %v385 = vsub.f32 %v28, %v384
  %v386 = vand.u32 %v385, 4294901760
  %387 = vmatmul.mubr.f32.gmra.mrb[0].mxu0 %v386
  %v388 = vpop.f32.mrb[0].mxu0
  %v389 = vadd.f32 %v299, %v388
  %v390 = vpop.f32.mrb[0].mxu0
  %391 = vdwg.mxu0
  %392 = vmatprep.subr.mxu0 0.0
  %v393 = vand.u32 %v19, 4294901760
  %v394 = vsub.f32 %v19, %v393
  %v395 = vand.u32 %v394, 4294901760
  %396 = vmatpush1.msra.mxu0 %v395
  %397 = vmatprep.subr.mxu0 0.0
  %398 = vmatpush1.msra.mxu0 0.0
  %399 = vmatprep.subr.mxu0 0.0
  %400 = vmatpush1.msra.mxu0 0.0
  %401 = vmatprep.subr.mxu0 0.0
  %402 = vmatpush1.msra.mxu0 0.0
  %403 = vmatprep.subr.mxu0 0.0
  %404 = vmatpush1.msra.mxu0 0.0
  %405 = vmatprep.subr.mxu0 0.0
  %406 = vmatpush1.msra.mxu0 0.0
  %407 = vmatprep.subr.mxu0 0.0
  %408 = vmatpush1.msra.mxu0 0.0
  %409 = vmatprep.subr.mxu0 0.0
  %410 = vmatpush1.msra.mxu0 0.0
  %411 = vmatprep.subr.mxu0 0.0
  %412 = vmatpush1.msra.mxu0 0.0
  %413 = vmatprep.subr.mxu0 0.0
  %414 = vmatpush1.msra.mxu0 0.0
  %415 = vmatprep.subr.mxu0 0.0
  %416 = vmatpush1.msra.mxu0 0.0
  %417 = vmatprep.subr.mxu0 0.0
  %418 = vmatpush1.msra.mxu0 0.0
  %419 = vmatprep.subr.mxu0 0.0
  %420 = vmatpush1.msra.mxu0 0.0
  %421 = vmatprep.subr.mxu0 0.0
  %422 = vmatpush1.msra.mxu0 0.0
  %423 = vmatprep.subr.mxu0 0.0
  %424 = vmatpush1.msra.mxu0 0.0
  %425 = vmatprep.subr.mxu0 0.0
  %426 = vmatpush1.msra.mxu0 0.0
  %427 = vmatprep.subr.mxu0 0.0
  %428 = vmatpush1.msra.mxu0 0.0
  %429 = vmatprep.subr.mxu0 0.0
  %430 = vmatpush1.msra.mxu0 0.0
  %431 = vmatprep.subr.mxu0 0.0
  %432 = vmatpush1.msra.mxu0 0.0
  %433 = vmatprep.subr.mxu0 0.0
  %434 = vmatpush1.msra.mxu0 0.0
  %435 = vmatprep.subr.mxu0 0.0
  %436 = vmatpush1.msra.mxu0 0.0
  %437 = vmatprep.subr.mxu0 0.0
  %438 = vmatpush1.msra.mxu0 0.0
  %439 = vmatprep.subr.mxu0 0.0
  %440 = vmatpush1.msra.mxu0 0.0
  %441 = vmatprep.subr.mxu0 0.0
  %442 = vmatpush1.msra.mxu0 0.0
  %443 = vmatprep.subr.mxu0 0.0
  %444 = vmatpush1.msra.mxu0 0.0
  %445 = vmatprep.subr.mxu0 0.0
  %446 = vmatpush1.msra.mxu0 0.0
  %447 = vmatprep.subr.mxu0 0.0
  %448 = vmatpush1.msra.mxu0 0.0
  %449 = vmatprep.subr.mxu0 0.0
  %450 = vmatpush1.msra.mxu0 0.0
  %451 = vmatprep.subr.mxu0 0.0
  %452 = vmatpush1.msra.mxu0 0.0
  %453 = vmatprep.subr.mxu0 0.0
  %454 = vmatpush1.msra.mxu0 0.0
  %455 = vmatprep.subr.mxu0 0.0
  %456 = vmatpush1.msra.mxu0 0.0
  %457 = vmatprep.subr.mxu0 0.0
  %458 = vmatpush1.msra.mxu0 0.0
  %459 = vmatprep.mubr.f32.mxu0 0.0
  %v460 = vand.u32 %v22, 4294901760
  %461 = vmatmul.mubr.f32.gmra.mrb[0].mxu0 %v460
  %v462 = vpop.f32.mrb[0].mxu0
  %v463 = vadd.f32 %v373, %v462
  %v464 = vpop.f32.mrb[0].mxu0
  %465 = vmatprep.mubr.f32.mxu0 0.0
  %v466 = vand.u32 %v25, 4294901760
  %467 = vmatmul.mubr.f32.gmra.mrb[0].mxu0 %v466
  %v468 = vpop.f32.mrb[0].mxu0
  %v469 = vadd.f32 %v381, %v468
  %v470 = vpop.f32.mrb[0].mxu0
  %471 = vmatprep.mubr.f32.mxu0 0.0
  %v472 = vand.u32 %v28, 4294901760
  %473 = vmatmul.mubr.f32.gmra.mrb[0].mxu0 %v472
  %v474 = vpop.f32.mrb[0].mxu0
  %v475 = vadd.f32 %v389, %v474
  %v476 = vpop.f32.mrb[0].mxu0
  %477 = vdwg.mxu0
  %478 = vmatprep.subr.mxu0 0.0
  %v479 = vand.u32 %v19, 4294901760
  %480 = vmatpush1.msra.mxu0 %v479
  %481 = vmatprep.subr.mxu0 0.0
  %482 = vmatpush1.msra.mxu0 0.0
  %483 = vmatprep.subr.mxu0 0.0
  %484 = vmatpush1.msra.mxu0 0.0
  %485 = vmatprep.subr.mxu0 0.0
  %486 = vmatpush1.msra.mxu0 0.0
  %487 = vmatprep.subr.mxu0 0.0
  %488 = vmatpush1.msra.mxu0 0.0
  %489 = vmatprep.subr.mxu0 0.0
  %490 = vmatpush1.msra.mxu0 0.0
  %491 = vmatprep.subr.mxu0 0.0
  %492 = vmatpush1.msra.mxu0 0.0
  %493 = vmatprep.subr.mxu0 0.0
  %494 = vmatpush1.msra.mxu0 0.0
  %495 = vmatprep.subr.mxu0 0.0
  %496 = vmatpush1.msra.mxu0 0.0
  %497 = vmatprep.subr.mxu0 0.0
  %498 = vmatpush1.msra.mxu0 0.0
  %499 = vmatprep.subr.mxu0 0.0
  %500 = vmatpush1.msra.mxu0 0.0
  %501 = vmatprep.subr.mxu0 0.0
  %502 = vmatpush1.msra.mxu0 0.0
  %503 = vmatprep.subr.mxu0 0.0
  %504 = vmatpush1.msra.mxu0 0.0
  %505 = vmatprep.subr.mxu0 0.0
  %506 = vmatpush1.msra.mxu0 0.0
  %507 = vmatprep.subr.mxu0 0.0
  %508 = vmatpush1.msra.mxu0 0.0
  %509 = vmatprep.subr.mxu0 0.0
  %510 = vmatpush1.msra.mxu0 0.0
  %511 = vmatprep.subr.mxu0 0.0
  %512 = vmatpush1.msra.mxu0 0.0
  %513 = vmatprep.subr.mxu0 0.0
  %514 = vmatpush1.msra.mxu0 0.0
  %515 = vmatprep.subr.mxu0 0.0
  %516 = vmatpush1.msra.mxu0 0.0
  %517 = vmatprep.subr.mxu0 0.0
  %518 = vmatpush1.msra.mxu0 0.0
  %519 = vmatprep.subr.mxu0 0.0
  %520 = vmatpush1.msra.mxu0 0.0
  %521 = vmatprep.subr.mxu0 0.0
  %522 = vmatpush1.msra.mxu0 0.0
  %523 = vmatprep.subr.mxu0 0.0
  %524 = vmatpush1.msra.mxu0 0.0
  %525 = vmatprep.subr.mxu0 0.0
  %526 = vmatpush1.msra.mxu0 0.0
  %527 = vmatprep.subr.mxu0 0.0
  %528 = vmatpush1.msra.mxu0 0.0
  %529 = vmatprep.subr.mxu0 0.0
  %530 = vmatpush1.msra.mxu0 0.0
  %531 = vmatprep.subr.mxu0 0.0
  %532 = vmatpush1.msra.mxu0 0.0
  %533 = vmatprep.subr.mxu0 0.0
  %534 = vmatpush1.msra.mxu0 0.0
  %535 = vmatprep.subr.mxu0 0.0
  %536 = vmatpush1.msra.mxu0 0.0
  %537 = vmatprep.subr.mxu0 0.0
  %538 = vmatpush1.msra.mxu0 0.0
  %539 = vmatprep.subr.mxu0 0.0
  %540 = vmatpush1.msra.mxu0 0.0
  %541 = vmatprep.subr.mxu0 0.0
  %542 = vmatpush1.msra.mxu0 0.0
  %543 = vmatprep.mubr.f32.mxu0 0.0
  %v544 = vand.u32 %v22, 4294901760
  %545 = vmatmul.mubr.f32.gmra.mrb[0].mxu0 %v544
  %v546 = vpop.f32.mrb[0].mxu0
  %v547 = vadd.f32 %v463, %v546
  %v548 = vpop.f32.mrb[0].mxu0
  %549 = vmatprep.mubr.f32.mxu0 0.0
  %v550 = vand.u32 %v25, 4294901760
  %551 = vmatmul.mubr.f32.gmra.mrb[0].mxu0 %v550
  %v552 = vpop.f32.mrb[0].mxu0
  %v553 = vadd.f32 %v469, %v552
  %v554 = vpop.f32.mrb[0].mxu0
  %555 = vmatprep.mubr.f32.mxu0 0.0
  %v556 = vand.u32 %v28, 4294901760
  %557 = vmatmul.mubr.f32.gmra.mrb[0].mxu0 %v556
  %v558 = vpop.f32.mrb[0].mxu0
  %v559 = vadd.f32 %v475, %v558
  %v560 = vpop.f32.mrb[0].mxu0
  %561 = vdwg.mxu0
  %v562 = vmul.f32 %v547, %v547
  %v563 = vmul.f32 %v553, %v553
  %v564 = vmul.f32 %v559, %v559
  %s565 = scalar_lea.vmem %s1, 8
  %v566 = vld [vmem:[%s565] sm:$0xff]
  %567 = vmatprep.subr.mxu0 0.0
  %v568 = vand.u32 %v566, 4294901760
  %569 = vmatpush1.msra.mxu0 %v568
  %570 = vmatprep.subr.mxu0 0.0
  %571 = vmatpush1.msra.mxu0 0.0
  %572 = vmatprep.subr.mxu0 0.0
  %573 = vmatpush1.msra.mxu0 0.0
  %574 = vmatprep.subr.mxu0 0.0
  %575 = vmatpush1.msra.mxu0 0.0
  %576 = vmatprep.subr.mxu0 0.0
  %577 = vmatpush1.msra.mxu0 0.0
  %578 = vmatprep.subr.mxu0 0.0
  %579 = vmatpush1.msra.mxu0 0.0
  %580 = vmatprep.subr.mxu0 0.0
  %581 = vmatpush1.msra.mxu0 0.0
  %582 = vmatprep.subr.mxu0 0.0
  %583 = vmatpush1.msra.mxu0 0.0
  %584 = vmatprep.subr.mxu0 0.0
  %585 = vmatpush1.msra.mxu0 0.0
  %586 = vmatprep.subr.mxu0 0.0
  %587 = vmatpush1.msra.mxu0 0.0
  %588 = vmatprep.subr.mxu0 0.0
  %589 = vmatpush1.msra.mxu0 0.0
  %590 = vmatprep.subr.mxu0 0.0
  %591 = vmatpush1.msra.mxu0 0.0
  %592 = vmatprep.subr.mxu0 0.0
  %593 = vmatpush1.msra.mxu0 0.0
  %594 = vmatprep.subr.mxu0 0.0
  %595 = vmatpush1.msra.mxu0 0.0
  %596 = vmatprep.subr.mxu0 0.0
  %597 = vmatpush1.msra.mxu0 0.0
  %598 = vmatprep.subr.mxu0 0.0
  %599 = vmatpush1.msra.mxu0 0.0
  %600 = vmatprep.subr.mxu0 0.0
  %601 = vmatpush1.msra.mxu0 0.0
  %602 = vmatprep.subr.mxu0 0.0
  %603 = vmatpush1.msra.mxu0 0.0
  %604 = vmatprep.subr.mxu0 0.0
  %605 = vmatpush1.msra.mxu0 0.0
  %606 = vmatprep.subr.mxu0 0.0
  %607 = vmatpush1.msra.mxu0 0.0
  %608 = vmatprep.subr.mxu0 0.0
  %609 = vmatpush1.msra.mxu0 0.0
  %610 = vmatprep.subr.mxu0 0.0
  %611 = vmatpush1.msra.mxu0 0.0
  %612 = vmatprep.subr.mxu0 0.0
  %613 = vmatpush1.msra.mxu0 0.0
  %614 = vmatprep.subr.mxu0 0.0
  %615 = vmatpush1.msra.mxu0 0.0
  %616 = vmatprep.subr.mxu0 0.0
  %617 = vmatpush1.msra.mxu0 0.0
  %618 = vmatprep.subr.mxu0 0.0
  %619 = vmatpush1.msra.mxu0 0.0
  %620 = vmatprep.subr.mxu0 0.0
  %621 = vmatpush1.msra.mxu0 0.0
  %622 = vmatprep.subr.mxu0 0.0
  %623 = vmatpush1.msra.mxu0 0.0
  %624 = vmatprep.subr.mxu0 0.0
  %625 = vmatpush1.msra.mxu0 0.0
  %626 = vmatprep.subr.mxu0 0.0
  %627 = vmatpush1.msra.mxu0 0.0
  %628 = vmatprep.subr.mxu0 0.0
  %629 = vmatpush1.msra.mxu0 0.0
  %630 = vmatprep.subr.mxu0 0.0
  %631 = vmatpush1.msra.mxu0 0.0
  %632 = vmatprep.mubr.f32.mxu0 0.0
  %v633 = vand.u32 %v22, 4294901760
  %v634 = vsub.f32 %v22, %v633
  %v635 = vand.u32 %v634, 4294901760
  %v636 = vsub.f32 %v634, %v635
  %v637 = vand.u32 %v636, 4294901760
  %638 = vmatmul.mubr.f32.gmra.mrb[0].mxu0 %v637
  %v639 = vpop.f32.mrb[0].mxu0
  %v640 = vadd.f32 0.0, %v639
  %v641 = vpop.f32.mrb[0].mxu0
  %642 = vmatprep.mubr.f32.mxu0 0.0
  %v643 = vand.u32 %v25, 4294901760
  %v644 = vsub.f32 %v25, %v643
  %v645 = vand.u32 %v644, 4294901760
  %v646 = vsub.f32 %v644, %v645
  %v647 = vand.u32 %v646, 4294901760
  %648 = vmatmul.mubr.f32.gmra.mrb[0].mxu0 %v647
  %v649 = vpop.f32.mrb[0].mxu0
  %v650 = vadd.f32 0.0, %v649
  %v651 = vpop.f32.mrb[0].mxu0
  %652 = vmatprep.mubr.f32.mxu0 0.0
  %v653 = vand.u32 %v28, 4294901760
  %v654 = vsub.f32 %v28, %v653
  %v655 = vand.u32 %v654, 4294901760
  %v656 = vsub.f32 %v654, %v655
  %v657 = vand.u32 %v656, 4294901760
  %658 = vmatmul.mubr.f32.gmra.mrb[0].mxu0 %v657
  %v659 = vpop.f32.mrb[0].mxu0
  %v660 = vadd.f32 0.0, %v659
  %v661 = vpop.f32.mrb[0].mxu0
  %662 = vdwg.mxu0
  %663 = vmatprep.subr.mxu0 0.0
  %v664 = vand.u32 %v566, 4294901760
  %v665 = vsub.f32 %v566, %v664
  %v666 = vand.u32 %v665, 4294901760
  %v667 = vsub.f32 %v665, %v666
  %v668 = vand.u32 %v667, 4294901760
  %669 = vmatpush1.msra.mxu0 %v668
  %670 = vmatprep.subr.mxu0 0.0
  %671 = vmatpush1.msra.mxu0 0.0
  %672 = vmatprep.subr.mxu0 0.0
  %673 = vmatpush1.msra.mxu0 0.0
  %674 = vmatprep.subr.mxu0 0.0
  %675 = vmatpush1.msra.mxu0 0.0
  %676 = vmatprep.subr.mxu0 0.0
  %677 = vmatpush1.msra.mxu0 0.0
  %678 = vmatprep.subr.mxu0 0.0
  %679 = vmatpush1.msra.mxu0 0.0
  %680 = vmatprep.subr.mxu0 0.0
  %681 = vmatpush1.msra.mxu0 0.0
  %682 = vmatprep.subr.mxu0 0.0
  %683 = vmatpush1.msra.mxu0 0.0
  %684 = vmatprep.subr.mxu0 0.0
  %685 = vmatpush1.msra.mxu0 0.0
  %686 = vmatprep.subr.mxu0 0.0
  %687 = vmatpush1.msra.mxu0 0.0
  %688 = vmatprep.subr.mxu0 0.0
  %689 = vmatpush1.msra.mxu0 0.0
  %690 = vmatprep.subr.mxu0 0.0
  %691 = vmatpush1.msra.mxu0 0.0
  %692 = vmatprep.subr.mxu0 0.0
  %693 = vmatpush1.msra.mxu0 0.0
  %694 = vmatprep.subr.mxu0 0.0
  %695 = vmatpush1.msra.mxu0 0.0
  %696 = vmatprep.subr.mxu0 0.0
  %697 = vmatpush1.msra.mxu0 0.0
  %698 = vmatprep.subr.mxu0 0.0
  %699 = vmatpush1.msra.mxu0 0.0
  %700 = vmatprep.subr.mxu0 0.0
  %701 = vmatpush1.msra.mxu0 0.0
  %702 = vmatprep.subr.mxu0 0.0
  %703 = vmatpush1.msra.mxu0 0.0
  %704 = vmatprep.subr.mxu0 0.0
  %705 = vmatpush1.msra.mxu0 0.0
  %706 = vmatprep.subr.mxu0 0.0
  %707 = vmatpush1.msra.mxu0 0.0
  %708 = vmatprep.subr.mxu0 0.0
  %709 = vmatpush1.msra.mxu0 0.0
  %710 = vmatprep.subr.mxu0 0.0
  %711 = vmatpush1.msra.mxu0 0.0
  %712 = vmatprep.subr.mxu0 0.0
  %713 = vmatpush1.msra.mxu0 0.0
  %714 = vmatprep.subr.mxu0 0.0
  %715 = vmatpush1.msra.mxu0 0.0
  %716 = vmatprep.subr.mxu0 0.0
  %717 = vmatpush1.msra.mxu0 0.0
  %718 = vmatprep.subr.mxu0 0.0
  %719 = vmatpush1.msra.mxu0 0.0
  %720 = vmatprep.subr.mxu0 0.0
  %721 = vmatpush1.msra.mxu0 0.0
  %722 = vmatprep.subr.mxu0 0.0
  %723 = vmatpush1.msra.mxu0 0.0
  %724 = vmatprep.subr.mxu0 0.0
  %725 = vmatpush1.msra.mxu0 0.0
  %726 = vmatprep.subr.mxu0 0.0
  %727 = vmatpush1.msra.mxu0 0.0
  %728 = vmatprep.subr.mxu0 0.0
  %729 = vmatpush1.msra.mxu0 0.0
  %730 = vmatprep.subr.mxu0 0.0
  %731 = vmatpush1.msra.mxu0 0.0
  %732 = vmatprep.mubr.f32.mxu0 0.0
  %v733 = vand.u32 %v22, 4294901760
  %734 = vmatmul.mubr.f32.gmra.mrb[0].mxu0 %v733
  %v735 = vpop.f32.mrb[0].mxu0
  %v736 = vadd.f32 %v640, %v735
  %v737 = vpop.f32.mrb[0].mxu0
  %738 = vmatprep.mubr.f32.mxu0 0.0
  %v739 = vand.u32 %v25, 4294901760
  %740 = vmatmul.mubr.f32.gmra.mrb[0].mxu0 %v739
  %v741 = vpop.f32.mrb[0].mxu0
  %v742 = vadd.f32 %v650, %v741
  %v743 = vpop.f32.mrb[0].mxu0
  %744 = vmatprep.mubr.f32.mxu0 0.0
  %v745 = vand.u32 %v28, 4294901760
  %746 = vmatmul.mubr.f32.gmra.mrb[0].mxu0 %v745
  %v747 = vpop.f32.mrb[0].mxu0
  %v748 = vadd.f32 %v660, %v747
  %v749 = vpop.f32.mrb[0].mxu0
  %750 = vdwg.mxu0
  %751 = vmatprep.subr.mxu0 0.0
  %v752 = vand.u32 %v566, 4294901760
  %v753 = vsub.f32 %v566, %v752
  %754 = vmatpush1.msra.mxu0 %v753
  %755 = vmatprep.subr.mxu0 0.0
  %756 = vmatpush1.msra.mxu0 0.0
  %757 = vmatprep.subr.mxu0 0.0
  %758 = vmatpush1.msra.mxu0 0.0
  %759 = vmatprep.subr.mxu0 0.0
  %760 = vmatpush1.msra.mxu0 0.0
  %761 = vmatprep.subr.mxu0 0.0
  %762 = vmatpush1.msra.mxu0 0.0
  %763 = vmatprep.subr.mxu0 0.0
  %764 = vmatpush1.msra.mxu0 0.0
  %765 = vmatprep.subr.mxu0 0.0
  %766 = vmatpush1.msra.mxu0 0.0
  %767 = vmatprep.subr.mxu0 0.0
  %768 = vmatpush1.msra.mxu0 0.0
  %769 = vmatprep.subr.mxu0 0.0
  %770 = vmatpush1.msra.mxu0 0.0
  %771 = vmatprep.subr.mxu0 0.0
  %772 = vmatpush1.msra.mxu0 0.0
  %773 = vmatprep.subr.mxu0 0.0
  %774 = vmatpush1.msra.mxu0 0.0
  %775 = vmatprep.subr.mxu0 0.0
  %776 = vmatpush1.msra.mxu0 0.0
  %777 = vmatprep.subr.mxu0 0.0
  %778 = vmatpush1.msra.mxu0 0.0
  %779 = vmatprep.subr.mxu0 0.0
  %780 = vmatpush1.msra.mxu0 0.0
  %781 = vmatprep.subr.mxu0 0.0
  %782 = vmatpush1.msra.mxu0 0.0
  %783 = vmatprep.subr.mxu0 0.0
  %784 = vmatpush1.msra.mxu0 0.0
  %785 = vmatprep.subr.mxu0 0.0
  %786 = vmatpush1.msra.mxu0 0.0
  %787 = vmatprep.subr.mxu0 0.0
  %788 = vmatpush1.msra.mxu0 0.0
  %789 = vmatprep.subr.mxu0 0.0
  %790 = vmatpush1.msra.mxu0 0.0
  %791 = vmatprep.subr.mxu0 0.0
  %792 = vmatpush1.msra.mxu0 0.0
  %793 = vmatprep.subr.mxu0 0.0
  %794 = vmatpush1.msra.mxu0 0.0
  %795 = vmatprep.subr.mxu0 0.0
  %796 = vmatpush1.msra.mxu0 0.0
  %797 = vmatprep.subr.mxu0 0.0
  %798 = vmatpush1.msra.mxu0 0.0
  %799 = vmatprep.subr.mxu0 0.0
  %800 = vmatpush1.msra.mxu0 0.0
  %801 = vmatprep.subr.mxu0 0.0
  %802 = vmatpush1.msra.mxu0 0.0
  %803 = vmatprep.subr.mxu0 0.0
  %804 = vmatpush1.msra.mxu0 0.0
  %805 = vmatprep.subr.mxu0 0.0
  %806 = vmatpush1.msra.mxu0 0.0
  %807 = vmatprep.subr.mxu0 0.0
  %808 = vmatpush1.msra.mxu0 0.0
  %809 = vmatprep.subr.mxu0 0.0
  %810 = vmatpush1.msra.mxu0 0.0
  %811 = vmatprep.subr.mxu0 0.0
  %812 = vmatpush1.msra.mxu0 0.0
  %813 = vmatprep.subr.mxu0 0.0
  %814 = vmatpush1.msra.mxu0 0.0
  %815 = vmatprep.subr.mxu0 0.0
  %816 = vmatpush1.msra.mxu0 0.0
  %817 = vmatprep.mubr.f32.mxu0 0.0
  %v818 = vand.u32 %v22, 4294901760
  %v819 = vsub.f32 %v22, %v818
  %820 = vmatmul.mubr.f32.gmra.mrb[0].mxu0 %v819
  %v821 = vpop.f32.mrb[0].mxu0
  %v822 = vadd.f32 %v736, %v821
  %v823 = vpop.f32.mrb[0].mxu0
  %824 = vmatprep.mubr.f32.mxu0 0.0
  %v825 = vand.u32 %v25, 4294901760
  %v826 = vsub.f32 %v25, %v825
  %827 = vmatmul.mubr.f32.gmra.mrb[0].mxu0 %v826
  %v828 = vpop.f32.mrb[0].mxu0
  %v829 = vadd.f32 %v742, %v828
  %v830 = vpop.f32.mrb[0].mxu0
  %831 = vmatprep.mubr.f32.mxu0 0.0
  %v832 = vand.u32 %v28, 4294901760
  %v833 = vsub.f32 %v28, %v832
  %834 = vmatmul.mubr.f32.gmra.mrb[0].mxu0 %v833
  %v835 = vpop.f32.mrb[0].mxu0
  %v836 = vadd.f32 %v748, %v835
  %v837 = vpop.f32.mrb[0].mxu0
  %838 = vdwg.mxu0
  %839 = vmatprep.subr.mxu0 0.0
  %v840 = vand.u32 %v566, 4294901760
  %841 = vmatpush1.msra.mxu0 %v840
  %842 = vmatprep.subr.mxu0 0.0
  %843 = vmatpush1.msra.mxu0 0.0
  %844 = vmatprep.subr.mxu0 0.0
  %845 = vmatpush1.msra.mxu0 0.0
  %846 = vmatprep.subr.mxu0 0.0
  %847 = vmatpush1.msra.mxu0 0.0
  %848 = vmatprep.subr.mxu0 0.0
  %849 = vmatpush1.msra.mxu0 0.0
  %850 = vmatprep.subr.mxu0 0.0
  %851 = vmatpush1.msra.mxu0 0.0
  %852 = vmatprep.subr.mxu0 0.0
  %853 = vmatpush1.msra.mxu0 0.0
  %854 = vmatprep.subr.mxu0 0.0
  %855 = vmatpush1.msra.mxu0 0.0
  %856 = vmatprep.subr.mxu0 0.0
  %857 = vmatpush1.msra.mxu0 0.0
  %858 = vmatprep.subr.mxu0 0.0
  %859 = vmatpush1.msra.mxu0 0.0
  %860 = vmatprep.subr.mxu0 0.0
  %861 = vmatpush1.msra.mxu0 0.0
  %862 = vmatprep.subr.mxu0 0.0
  %863 = vmatpush1.msra.mxu0 0.0
  %864 = vmatprep.subr.mxu0 0.0
  %865 = vmatpush1.msra.mxu0 0.0
  %866 = vmatprep.subr.mxu0 0.0
  %867 = vmatpush1.msra.mxu0 0.0
  %868 = vmatprep.subr.mxu0 0.0
  %869 = vmatpush1.msra.mxu0 0.0
  %870 = vmatprep.subr.mxu0 0.0
  %871 = vmatpush1.msra.mxu0 0.0
  %872 = vmatprep.subr.mxu0 0.0
  %873 = vmatpush1.msra.mxu0 0.0
  %874 = vmatprep.subr.mxu0 0.0
  %875 = vmatpush1.msra.mxu0 0.0
  %876 = vmatprep.subr.mxu0 0.0
  %877 = vmatpush1.msra.mxu0 0.0
  %878 = vmatprep.subr.mxu0 0.0
  %879 = vmatpush1.msra.mxu0 0.0
  %880 = vmatprep.subr.mxu0 0.0
  %881 = vmatpush1.msra.mxu0 0.0
  %882 = vmatprep.subr.mxu0 0.0
  %883 = vmatpush1.msra.mxu0 0.0
  %884 = vmatprep.subr.mxu0 0.0
  %885 = vmatpush1.msra.mxu0 0.0
  %886 = vmatprep.subr.mxu0 0.0
  %887 = vmatpush1.msra.mxu0 0.0
  %888 = vmatprep.subr.mxu0 0.0
  %889 = vmatpush1.msra.mxu0 0.0
  %890 = vmatprep.subr.mxu0 0.0
  %891 = vmatpush1.msra.mxu0 0.0
  %892 = vmatprep.subr.mxu0 0.0
  %893 = vmatpush1.msra.mxu0 0.0
  %894 = vmatprep.subr.mxu0 0.0
  %895 = vmatpush1.msra.mxu0 0.0
  %896 = vmatprep.subr.mxu0 0.0
  %897 = vmatpush1.msra.mxu0 0.0
  %898 = vmatprep.subr.mxu0 0.0
  %899 = vmatpush1.msra.mxu0 0.0
  %900 = vmatprep.subr.mxu0 0.0
  %901 = vmatpush1.msra.mxu0 0.0
  %902 = vmatprep.subr.mxu0 0.0
  %903 = vmatpush1.msra.mxu0 0.0
  %904 = vmatprep.mubr.f32.mxu0 0.0
  %v905 = vand.u32 %v22, 4294901760
  %v906 = vsub.f32 %v22, %v905
  %v907 = vand.u32 %v906, 4294901760
  %908 = vmatmul.mubr.f32.gmra.mrb[0].mxu0 %v907
  %v909 = vpop.f32.mrb[0].mxu0
  %v910 = vadd.f32 %v822, %v909
  %v911 = vpop.f32.mrb[0].mxu0
  %912 = vmatprep.mubr.f32.mxu0 0.0
  %v913 = vand.u32 %v25, 4294901760
  %v914 = vsub.f32 %v25, %v913
  %v915 = vand.u32 %v914, 4294901760
  %916 = vmatmul.mubr.f32.gmra.mrb[0].mxu0 %v915
  %v917 = vpop.f32.mrb[0].mxu0
  %v918 = vadd.f32 %v829, %v917
  %v919 = vpop.f32.mrb[0].mxu0
  %920 = vmatprep.mubr.f32.mxu0 0.0
  %v921 = vand.u32 %v28, 4294901760
  %v922 = vsub.f32 %v28, %v921
  %v923 = vand.u32 %v922, 4294901760
  %924 = vmatmul.mubr.f32.gmra.mrb[0].mxu0 %v923
  %v925 = vpop.f32.mrb[0].mxu0
  %v926 = vadd.f32 %v836, %v925
  %v927 = vpop.f32.mrb[0].mxu0
  %928 = vdwg.mxu0
  %929 = vmatprep.subr.mxu0 0.0
  %v930 = vand.u32 %v566, 4294901760
  %v931 = vsub.f32 %v566, %v930
  %v932 = vand.u32 %v931, 4294901760
  %933 = vmatpush1.msra.mxu0 %v932
  %934 = vmatprep.subr.mxu0 0.0
  %935 = vmatpush1.msra.mxu0 0.0
  %936 = vmatprep.subr.mxu0 0.0
  %937 = vmatpush1.msra.mxu0 0.0
  %938 = vmatprep.subr.mxu0 0.0
  %939 = vmatpush1.msra.mxu0 0.0
  %940 = vmatprep.subr.mxu0 0.0
  %941 = vmatpush1.msra.mxu0 0.0
  %942 = vmatprep.subr.mxu0 0.0
  %943 = vmatpush1.msra.mxu0 0.0
  %944 = vmatprep.subr.mxu0 0.0
  %945 = vmatpush1.msra.mxu0 0.0
  %946 = vmatprep.subr.mxu0 0.0
  %947 = vmatpush1.msra.mxu0 0.0
  %948 = vmatprep.subr.mxu0 0.0
  %949 = vmatpush1.msra.mxu0 0.0
  %950 = vmatprep.subr.mxu0 0.0
  %951 = vmatpush1.msra.mxu0 0.0
  %952 = vmatprep.subr.mxu0 0.0
  %953 = vmatpush1.msra.mxu0 0.0
  %954 = vmatprep.subr.mxu0 0.0
  %955 = vmatpush1.msra.mxu0 0.0
  %956 = vmatprep.subr.mxu0 0.0
  %957 = vmatpush1.msra.mxu0 0.0
  %958 = vmatprep.subr.mxu0 0.0
  %959 = vmatpush1.msra.mxu0 0.0
  %960 = vmatprep.subr.mxu0 0.0
  %961 = vmatpush1.msra.mxu0 0.0
  %962 = vmatprep.subr.mxu0 0.0
  %963 = vmatpush1.msra.mxu0 0.0
  %964 = vmatprep.subr.mxu0 0.0
  %965 = vmatpush1.msra.mxu0 0.0
  %966 = vmatprep.subr.mxu0 0.0
  %967 = vmatpush1.msra.mxu0 0.0
  %968 = vmatprep.subr.mxu0 0.0
  %969 = vmatpush1.msra.mxu0 0.0
  %970 = vmatprep.subr.mxu0 0.0
  %971 = vmatpush1.msra.mxu0 0.0
  %972 = vmatprep.subr.mxu0 0.0
  %973 = vmatpush1.msra.mxu0 0.0
  %974 = vmatprep.subr.mxu0 0.0
  %975 = vmatpush1.msra.mxu0 0.0
  %976 = vmatprep.subr.mxu0 0.0
  %977 = vmatpush1.msra.mxu0 0.0
  %978 = vmatprep.subr.mxu0 0.0
  %979 = vmatpush1.msra.mxu0 0.0
  %980 = vmatprep.subr.mxu0 0.0
  %981 = vmatpush1.msra.mxu0 0.0
  %982 = vmatprep.subr.mxu0 0.0
  %983 = vmatpush1.msra.mxu0 0.0
  %984 = vmatprep.subr.mxu0 0.0
  %985 = vmatpush1.msra.mxu0 0.0
  %986 = vmatprep.subr.mxu0 0.0
  %987 = vmatpush1.msra.mxu0 0.0
  %988 = vmatprep.subr.mxu0 0.0
  %989 = vmatpush1.msra.mxu0 0.0
  %990 = vmatprep.subr.mxu0 0.0
  %991 = vmatpush1.msra.mxu0 0.0
  %992 = vmatprep.subr.mxu0 0.0
  %993 = vmatpush1.msra.mxu0 0.0
  %994 = vmatprep.subr.mxu0 0.0
  %995 = vmatpush1.msra.mxu0 0.0
  %996 = vmatprep.mubr.f32.mxu0 0.0
  %v997 = vand.u32 %v22, 4294901760
  %998 = vmatmul.mubr.f32.gmra.mrb[0].mxu0 %v997
  %v999 = vpop.f32.mrb[0].mxu0
  %v1000 = vadd.f32 %v910, %v999
  %v1001 = vpop.f32.mrb[0].mxu0
  %1002 = vmatprep.mubr.f32.mxu0 0.0
  %v1003 = vand.u32 %v25, 4294901760
  %1004 = vmatmul.mubr.f32.gmra.mrb[0].mxu0 %v1003
  %v1005 = vpop.f32.mrb[0].mxu0
  %v1006 = vadd.f32 %v918, %v1005
  %v1007 = vpop.f32.mrb[0].mxu0
  %1008 = vmatprep.mubr.f32.mxu0 0.0
  %v1009 = vand.u32 %v28, 4294901760
  %1010 = vmatmul.mubr.f32.gmra.mrb[0].mxu0 %v1009
  %v1011 = vpop.f32.mrb[0].mxu0
  %v1012 = vadd.f32 %v926, %v1011
  %v1013 = vpop.f32.mrb[0].mxu0
  %1014 = vdwg.mxu0
  %1015 = vmatprep.subr.mxu0 0.0
  %v1016 = vand.u32 %v566, 4294901760
  %1017 = vmatpush1.msra.mxu0 %v1016
  %1018 = vmatprep.subr.mxu0 0.0
  %1019 = vmatpush1.msra.mxu0 0.0
  %1020 = vmatprep.subr.mxu0 0.0
  %1021 = vmatpush1.msra.mxu0 0.0
  %1022 = vmatprep.subr.mxu0 0.0
  %1023 = vmatpush1.msra.mxu0 0.0
  %1024 = vmatprep.subr.mxu0 0.0
  %1025 = vmatpush1.msra.mxu0 0.0
  %1026 = vmatprep.subr.mxu0 0.0
  %1027 = vmatpush1.msra.mxu0 0.0
  %1028 = vmatprep.subr.mxu0 0.0
  %1029 = vmatpush1.msra.mxu0 0.0
  %1030 = vmatprep.subr.mxu0 0.0
  %1031 = vmatpush1.msra.mxu0 0.0
  %1032 = vmatprep.subr.mxu0 0.0
  %1033 = vmatpush1.msra.mxu0 0.0
  %1034 = vmatprep.subr.mxu0 0.0
  %1035 = vmatpush1.msra.mxu0 0.0
  %1036 = vmatprep.subr.mxu0 0.0
  %1037 = vmatpush1.msra.mxu0 0.0
  %1038 = vmatprep.subr.mxu0 0.0
  %1039 = vmatpush1.msra.mxu0 0.0
  %1040 = vmatprep.subr.mxu0 0.0
  %1041 = vmatpush1.msra.mxu0 0.0
  %1042 = vmatprep.subr.mxu0 0.0
  %1043 = vmatpush1.msra.mxu0 0.0
  %1044 = vmatprep.subr.mxu0 0.0
  %1045 = vmatpush1.msra.mxu0 0.0
  %1046 = vmatprep.subr.mxu0 0.0
  %1047 = vmatpush1.msra.mxu0 0.0
  %1048 = vmatprep.subr.mxu0 0.0
  %1049 = vmatpush1.msra.mxu0 0.0
  %1050 = vmatprep.subr.mxu0 0.0
  %1051 = vmatpush1.msra.mxu0 0.0
  %1052 = vmatprep.subr.mxu0 0.0
  %1053 = vmatpush1.msra.mxu0 0.0
  %1054 = vmatprep.subr.mxu0 0.0
  %1055 = vmatpush1.msra.mxu0 0.0
  %1056 = vmatprep.subr.mxu0 0.0
  %1057 = vmatpush1.msra.mxu0 0.0
  %1058 = vmatprep.subr.mxu0 0.0
  %1059 = vmatpush1.msra.mxu0 0.0
  %1060 = vmatprep.subr.mxu0 0.0
  %1061 = vmatpush1.msra.mxu0 0.0
  %1062 = vmatprep.subr.mxu0 0.0
  %1063 = vmatpush1.msra.mxu0 0.0
  %1064 = vmatprep.subr.mxu0 0.0
  %1065 = vmatpush1.msra.mxu0 0.0
  %1066 = vmatprep.subr.mxu0 0.0
  %1067 = vmatpush1.msra.mxu0 0.0
  %1068 = vmatprep.subr.mxu0 0.0
  %1069 = vmatpush1.msra.mxu0 0.0
  %1070 = vmatprep.subr.mxu0 0.0
  %1071 = vmatpush1.msra.mxu0 0.0
  %1072 = vmatprep.subr.mxu0 0.0
  %1073 = vmatpush1.msra.mxu0 0.0
  %1074 = vmatprep.subr.mxu0 0.0
  %1075 = vmatpush1.msra.mxu0 0.0
  %1076 = vmatprep.subr.mxu0 0.0
  %1077 = vmatpush1.msra.mxu0 0.0
  %1078 = vmatprep.subr.mxu0 0.0
  %1079 = vmatpush1.msra.mxu0 0.0
  %1080 = vmatprep.mubr.f32.mxu0 0.0
  %v1081 = vand.u32 %v22, 4294901760
  %1082 = vmatmul.mubr.f32.gmra.mrb[0].mxu0 %v1081
  %v1083 = vpop.f32.mrb[0].mxu0
  %v1084 = vadd.f32 %v1000, %v1083
  %v1085 = vpop.f32.mrb[0].mxu0
  %1086 = vmatprep.mubr.f32.mxu0 0.0
  %v1087 = vand.u32 %v25, 4294901760
  %1088 = vmatmul.mubr.f32.gmra.mrb[0].mxu0 %v1087
  %v1089 = vpop.f32.mrb[0].mxu0
  %v1090 = vadd.f32 %v1006, %v1089
  %v1091 = vpop.f32.mrb[0].mxu0
  %1092 = vmatprep.mubr.f32.mxu0 0.0
  %v1093 = vand.u32 %v28, 4294901760
  %1094 = vmatmul.mubr.f32.gmra.mrb[0].mxu0 %v1093
  %v1095 = vpop.f32.mrb[0].mxu0
  %v1096 = vadd.f32 %v1012, %v1095
  %v1097 = vpop.f32.mrb[0].mxu0
  %1098 = vdwg.mxu0
  %v1099 = vmul.f32 %v1084, %v1084
  %v1100 = vmul.f32 %v1090, %v1090
  %v1101 = vmul.f32 %v1096, %v1096
  %v1102 = vadd.f32 %v562, %v1099
  %v1103 = vadd.f32 %v563, %v1100
  %v1104 = vadd.f32 %v564, %v1101
  %s1105 = scalar_lea.vmem %s1, 16
  %v1106 = vld [vmem:[%s1105] sm:$0xff]
  %1107 = vmatprep.subr.mxu0 0.0
  %v1108 = vand.u32 %v1106, 4294901760
  %1109 = vmatpush1.msra.mxu0 %v1108
  %1110 = vmatprep.subr.mxu0 0.0
  %1111 = vmatpush1.msra.mxu0 0.0
  %1112 = vmatprep.subr.mxu0 0.0
  %1113 = vmatpush1.msra.mxu0 0.0
  %1114 = vmatprep.subr.mxu0 0.0
  %1115 = vmatpush1.msra.mxu0 0.0
  %1116 = vmatprep.subr.mxu0 0.0
  %1117 = vmatpush1.msra.mxu0 0.0
  %1118 = vmatprep.subr.mxu0 0.0
  %1119 = vmatpush1.msra.mxu0 0.0
  %1120 = vmatprep.subr.mxu0 0.0
  %1121 = vmatpush1.msra.mxu0 0.0
  %1122 = vmatprep.subr.mxu0 0.0
  %1123 = vmatpush1.msra.mxu0 0.0
  %1124 = vmatprep.subr.mxu0 0.0
  %1125 = vmatpush1.msra.mxu0 0.0
  %1126 = vmatprep.subr.mxu0 0.0
  %1127 = vmatpush1.msra.mxu0 0.0
  %1128 = vmatprep.subr.mxu0 0.0
  %1129 = vmatpush1.msra.mxu0 0.0
  %1130 = vmatprep.subr.mxu0 0.0
  %1131 = vmatpush1.msra.mxu0 0.0
  %1132 = vmatprep.subr.mxu0 0.0
  %1133 = vmatpush1.msra.mxu0 0.0
  %1134 = vmatprep.subr.mxu0 0.0
  %1135 = vmatpush1.msra.mxu0 0.0
  %1136 = vmatprep.subr.mxu0 0.0
  %1137 = vmatpush1.msra.mxu0 0.0
  %1138 = vmatprep.subr.mxu0 0.0
  %1139 = vmatpush1.msra.mxu0 0.0
  %1140 = vmatprep.subr.mxu0 0.0
  %1141 = vmatpush1.msra.mxu0 0.0
  %1142 = vmatprep.subr.mxu0 0.0
  %1143 = vmatpush1.msra.mxu0 0.0
  %1144 = vmatprep.subr.mxu0 0.0
  %1145 = vmatpush1.msra.mxu0 0.0
  %1146 = vmatprep.subr.mxu0 0.0
  %1147 = vmatpush1.msra.mxu0 0.0
  %1148 = vmatprep.subr.mxu0 0.0
  %1149 = vmatpush1.msra.mxu0 0.0
  %1150 = vmatprep.subr.mxu0 0.0
  %1151 = vmatpush1.msra.mxu0 0.0
  %1152 = vmatprep.subr.mxu0 0.0
  %1153 = vmatpush1.msra.mxu0 0.0
  %1154 = vmatprep.subr.mxu0 0.0
  %1155 = vmatpush1.msra.mxu0 0.0
  %1156 = vmatprep.subr.mxu0 0.0
  %1157 = vmatpush1.msra.mxu0 0.0
  %1158 = vmatprep.subr.mxu0 0.0
  %1159 = vmatpush1.msra.mxu0 0.0
  %1160 = vmatprep.subr.mxu0 0.0
  %1161 = vmatpush1.msra.mxu0 0.0
  %1162 = vmatprep.subr.mxu0 0.0
  %1163 = vmatpush1.msra.mxu0 0.0
  %1164 = vmatprep.subr.mxu0 0.0
  %1165 = vmatpush1.msra.mxu0 0.0
  %1166 = vmatprep.subr.mxu0 0.0
  %1167 = vmatpush1.msra.mxu0 0.0
  %1168 = vmatprep.subr.mxu0 0.0
  %1169 = vmatpush1.msra.mxu0 0.0
  %1170 = vmatprep.subr.mxu0 0.0
  %1171 = vmatpush1.msra.mxu0 0.0
  %1172 = vmatprep.mubr.f32.mxu0 0.0
  %v1173 = vand.u32 %v22, 4294901760
  %v1174 = vsub.f32 %v22, %v1173
  %v1175 = vand.u32 %v1174, 4294901760
  %v1176 = vsub.f32 %v1174, %v1175
  %v1177 = vand.u32 %v1176, 4294901760
  %1178 = vmatmul.mubr.f32.gmra.mrb[0].mxu0 %v1177
  %v1179 = vpop.f32.mrb[0].mxu0
  %v1180 = vadd.f32 0.0, %v1179
  %v1181 = vpop.f32.mrb[0].mxu0
  %1182 = vmatprep.mubr.f32.mxu0 0.0
  %v1183 = vand.u32 %v25, 4294901760
  %v1184 = vsub.f32 %v25, %v1183
  %v1185 = vand.u32 %v1184, 4294901760
  %v1186 = vsub.f32 %v1184, %v1185
  %v1187 = vand.u32 %v1186, 4294901760
  %1188 = vmatmul.mubr.f32.gmra.mrb[0].mxu0 %v1187
  %v1189 = vpop.f32.mrb[0].mxu0
  %v1190 = vadd.f32 0.0, %v1189
  %v1191 = vpop.f32.mrb[0].mxu0
  %1192 = vmatprep.mubr.f32.mxu0 0.0
  %v1193 = vand.u32 %v28, 4294901760
  %v1194 = vsub.f32 %v28, %v1193
  %v1195 = vand.u32 %v1194, 4294901760
  %v1196 = vsub.f32 %v1194, %v1195
  %v1197 = vand.u32 %v1196, 4294901760
  %1198 = vmatmul.mubr.f32.gmra.mrb[0].mxu0 %v1197
  %v1199 = vpop.f32.mrb[0].mxu0
  %v1200 = vadd.f32 0.0, %v1199
  %v1201 = vpop.f32.mrb[0].mxu0
  %1202 = vdwg.mxu0
  %1203 = vmatprep.subr.mxu0 0.0
  %v1204 = vand.u32 %v1106, 4294901760
  %v1205 = vsub.f32 %v1106, %v1204
  %v1206 = vand.u32 %v1205, 4294901760
  %v1207 = vsub.f32 %v1205, %v1206
  %v1208 = vand.u32 %v1207, 4294901760
  %1209 = vmatpush1.msra.mxu0 %v1208
  %1210 = vmatprep.subr.mxu0 0.0
  %1211 = vmatpush1.msra.mxu0 0.0
  %1212 = vmatprep.subr.mxu0 0.0
  %1213 = vmatpush1.msra.mxu0 0.0
  %1214 = vmatprep.subr.mxu0 0.0
  %1215 = vmatpush1.msra.mxu0 0.0
  %1216 = vmatprep.subr.mxu0 0.0
  %1217 = vmatpush1.msra.mxu0 0.0
  %1218 = vmatprep.subr.mxu0 0.0
  %1219 = vmatpush1.msra.mxu0 0.0
  %1220 = vmatprep.subr.mxu0 0.0
  %1221 = vmatpush1.msra.mxu0 0.0
  %1222 = vmatprep.subr.mxu0 0.0
  %1223 = vmatpush1.msra.mxu0 0.0
  %1224 = vmatprep.subr.mxu0 0.0
  %1225 = vmatpush1.msra.mxu0 0.0
  %1226 = vmatprep.subr.mxu0 0.0
  %1227 = vmatpush1.msra.mxu0 0.0
  %1228 = vmatprep.subr.mxu0 0.0
  %1229 = vmatpush1.msra.mxu0 0.0
  %1230 = vmatprep.subr.mxu0 0.0
  %1231 = vmatpush1.msra.mxu0 0.0
  %1232 = vmatprep.subr.mxu0 0.0
  %1233 = vmatpush1.msra.mxu0 0.0
  %1234 = vmatprep.subr.mxu0 0.0
  %1235 = vmatpush1.msra.mxu0 0.0
  %1236 = vmatprep.subr.mxu0 0.0
  %1237 = vmatpush1.msra.mxu0 0.0
  %1238 = vmatprep.subr.mxu0 0.0
  %1239 = vmatpush1.msra.mxu0 0.0
  %1240 = vmatprep.subr.mxu0 0.0
  %1241 = vmatpush1.msra.mxu0 0.0
  %1242 = vmatprep.subr.mxu0 0.0
  %1243 = vmatpush1.msra.mxu0 0.0
  %1244 = vmatprep.subr.mxu0 0.0
  %1245 = vmatpush1.msra.mxu0 0.0
  %1246 = vmatprep.subr.mxu0 0.0
  %1247 = vmatpush1.msra.mxu0 0.0
  %1248 = vmatprep.subr.mxu0 0.0
  %1249 = vmatpush1.msra.mxu0 0.0
  %1250 = vmatprep.subr.mxu0 0.0
  %1251 = vmatpush1.msra.mxu0 0.0
  %1252 = vmatprep.subr.mxu0 0.0
  %1253 = vmatpush1.msra.mxu0 0.0
  %1254 = vmatprep.subr.mxu0 0.0
  %1255 = vmatpush1.msra.mxu0 0.0
  %1256 = vmatprep.subr.mxu0 0.0
  %1257 = vmatpush1.msra.mxu0 0.0
  %1258 = vmatprep.subr.mxu0 0.0
  %1259 = vmatpush1.msra.mxu0 0.0
  %1260 = vmatprep.subr.mxu0 0.0
  %1261 = vmatpush1.msra.mxu0 0.0
  %1262 = vmatprep.subr.mxu0 0.0
  %1263 = vmatpush1.msra.mxu0 0.0
  %1264 = vmatprep.subr.mxu0 0.0
  %1265 = vmatpush1.msra.mxu0 0.0
  %1266 = vmatprep.subr.mxu0 0.0
  %1267 = vmatpush1.msra.mxu0 0.0
  %1268 = vmatprep.subr.mxu0 0.0
  %1269 = vmatpush1.msra.mxu0 0.0
  %1270 = vmatprep.subr.mxu0 0.0
  %1271 = vmatpush1.msra.mxu0 0.0
  %1272 = vmatprep.mubr.f32.mxu0 0.0
  %v1273 = vand.u32 %v22, 4294901760
  %1274 = vmatmul.mubr.f32.gmra.mrb[0].mxu0 %v1273
  %v1275 = vpop.f32.mrb[0].mxu0
  %v1276 = vadd.f32 %v1180, %v1275
  %v1277 = vpop.f32.mrb[0].mxu0
  %1278 = vmatprep.mubr.f32.mxu0 0.0
  %v1279 = vand.u32 %v25, 4294901760
  %1280 = vmatmul.mubr.f32.gmra.mrb[0].mxu0 %v1279
  %v1281 = vpop.f32.mrb[0].mxu0
  %v1282 = vadd.f32 %v1190, %v1281
  %v1283 = vpop.f32.mrb[0].mxu0
  %1284 = vmatprep.mubr.f32.mxu0 0.0
  %v1285 = vand.u32 %v28, 4294901760
  %1286 = vmatmul.mubr.f32.gmra.mrb[0].mxu0 %v1285
  %v1287 = vpop.f32.mrb[0].mxu0
  %v1288 = vadd.f32 %v1200, %v1287
  %v1289 = vpop.f32.mrb[0].mxu0
  %1290 = vdwg.mxu0
  %1291 = vmatprep.subr.mxu0 0.0
  %v1292 = vand.u32 %v1106, 4294901760
  %v1293 = vsub.f32 %v1106, %v1292
  %1294 = vmatpush1.msra.mxu0 %v1293
  %1295 = vmatprep.subr.mxu0 0.0
  %1296 = vmatpush1.msra.mxu0 0.0
  %1297 = vmatprep.subr.mxu0 0.0
  %1298 = vmatpush1.msra.mxu0 0.0
  %1299 = vmatprep.subr.mxu0 0.0
  %1300 = vmatpush1.msra.mxu0 0.0
  %1301 = vmatprep.subr.mxu0 0.0
  %1302 = vmatpush1.msra.mxu0 0.0
  %1303 = vmatprep.subr.mxu0 0.0
  %1304 = vmatpush1.msra.mxu0 0.0
  %1305 = vmatprep.subr.mxu0 0.0
  %1306 = vmatpush1.msra.mxu0 0.0
  %1307 = vmatprep.subr.mxu0 0.0
  %1308 = vmatpush1.msra.mxu0 0.0
  %1309 = vmatprep.subr.mxu0 0.0
  %1310 = vmatpush1.msra.mxu0 0.0
  %1311 = vmatprep.subr.mxu0 0.0
  %1312 = vmatpush1.msra.mxu0 0.0
  %1313 = vmatprep.subr.mxu0 0.0
  %1314 = vmatpush1.msra.mxu0 0.0
  %1315 = vmatprep.subr.mxu0 0.0
  %1316 = vmatpush1.msra.mxu0 0.0
  %1317 = vmatprep.subr.mxu0 0.0
  %1318 = vmatpush1.msra.mxu0 0.0
  %1319 = vmatprep.subr.mxu0 0.0
  %1320 = vmatpush1.msra.mxu0 0.0
  %1321 = vmatprep.subr.mxu0 0.0
  %1322 = vmatpush1.msra.mxu0 0.0
  %1323 = vmatprep.subr.mxu0 0.0
  %1324 = vmatpush1.msra.mxu0 0.0
  %1325 = vmatprep.subr.mxu0 0.0
  %1326 = vmatpush1.msra.mxu0 0.0
  %1327 = vmatprep.subr.mxu0 0.0
  %1328 = vmatpush1.msra.mxu0 0.0
  %1329 = vmatprep.subr.mxu0 0.0
  %1330 = vmatpush1.msra.mxu0 0.0
  %1331 = vmatprep.subr.mxu0 0.0
  %1332 = vmatpush1.msra.mxu0 0.0
  %1333 = vmatprep.subr.mxu0 0.0
  %1334 = vmatpush1.msra.mxu0 0.0
  %1335 = vmatprep.subr.mxu0 0.0
  %1336 = vmatpush1.msra.mxu0 0.0
  %1337 = vmatprep.subr.mxu0 0.0
  %1338 = vmatpush1.msra.mxu0 0.0
  %1339 = vmatprep.subr.mxu0 0.0
  %1340 = vmatpush1.msra.mxu0 0.0
  %1341 = vmatprep.subr.mxu0 0.0
  %1342 = vmatpush1.msra.mxu0 0.0
  %1343 = vmatprep.subr.mxu0 0.0
  %1344 = vmatpush1.msra.mxu0 0.0
  %1345 = vmatprep.subr.mxu0 0.0
  %1346 = vmatpush1.msra.mxu0 0.0
  %1347 = vmatprep.subr.mxu0 0.0
  %1348 = vmatpush1.msra.mxu0 0.0
  %1349 = vmatprep.subr.mxu0 0.0
  %1350 = vmatpush1.msra.mxu0 0.0
  %1351 = vmatprep.subr.mxu0 0.0
  %1352 = vmatpush1.msra.mxu0 0.0
  %1353 = vmatprep.subr.mxu0 0.0
  %1354 = vmatpush1.msra.mxu0 0.0
  %1355 = vmatprep.subr.mxu0 0.0
  %1356 = vmatpush1.msra.mxu0 0.0
  %1357 = vmatprep.mubr.f32.mxu0 0.0
  %v1358 = vand.u32 %v22, 4294901760
  %v1359 = vsub.f32 %v22, %v1358
  %1360 = vmatmul.mubr.f32.gmra.mrb[0].mxu0 %v1359
  %v1361 = vpop.f32.mrb[0].mxu0
  %v1362 = vadd.f32 %v1276, %v1361
  %v1363 = vpop.f32.mrb[0].mxu0
  %1364 = vmatprep.mubr.f32.mxu0 0.0
  %v1365 = vand.u32 %v25, 4294901760
  %v1366 = vsub.f32 %v25, %v1365
  %1367 = vmatmul.mubr.f32.gmra.mrb[0].mxu0 %v1366
  %v1368 = vpop.f32.mrb[0].mxu0
  %v1369 = vadd.f32 %v1282, %v1368
  %v1370 = vpop.f32.mrb[0].mxu0
  %1371 = vmatprep.mubr.f32.mxu0 0.0
  %v1372 = vand.u32 %v28, 4294901760
  %v1373 = vsub.f32 %v28, %v1372
  %1374 = vmatmul.mubr.f32.gmra.mrb[0].mxu0 %v1373
  %v1375 = vpop.f32.mrb[0].mxu0
  %v1376 = vadd.f32 %v1288, %v1375
  %v1377 = vpop.f32.mrb[0].mxu0
  %1378 = vdwg.mxu0
  %1379 = vmatprep.subr.mxu0 0.0
  %v1380 = vand.u32 %v1106, 4294901760
  %1381 = vmatpush1.msra.mxu0 %v1380
  %1382 = vmatprep.subr.mxu0 0.0
  %1383 = vmatpush1.msra.mxu0 0.0
  %1384 = vmatprep.subr.mxu0 0.0
  %1385 = vmatpush1.msra.mxu0 0.0
  %1386 = vmatprep.subr.mxu0 0.0
  %1387 = vmatpush1.msra.mxu0 0.0
  %1388 = vmatprep.subr.mxu0 0.0
  %1389 = vmatpush1.msra.mxu0 0.0
  %1390 = vmatprep.subr.mxu0 0.0
  %1391 = vmatpush1.msra.mxu0 0.0
  %1392 = vmatprep.subr.mxu0 0.0
  %1393 = vmatpush1.msra.mxu0 0.0
  %1394 = vmatprep.subr.mxu0 0.0
  %1395 = vmatpush1.msra.mxu0 0.0
  %1396 = vmatprep.subr.mxu0 0.0
  %1397 = vmatpush1.msra.mxu0 0.0
  %1398 = vmatprep.subr.mxu0 0.0
  %1399 = vmatpush1.msra.mxu0 0.0
  %1400 = vmatprep.subr.mxu0 0.0
  %1401 = vmatpush1.msra.mxu0 0.0
  %1402 = vmatprep.subr.mxu0 0.0
  %1403 = vmatpush1.msra.mxu0 0.0
  %1404 = vmatprep.subr.mxu0 0.0
  %1405 = vmatpush1.msra.mxu0 0.0
  %1406 = vmatprep.subr.mxu0 0.0
  %1407 = vmatpush1.msra.mxu0 0.0
  %1408 = vmatprep.subr.mxu0 0.0
  %1409 = vmatpush1.msra.mxu0 0.0
  %1410 = vmatprep.subr.mxu0 0.0
  %1411 = vmatpush1.msra.mxu0 0.0
  %1412 = vmatprep.subr.mxu0 0.0
  %1413 = vmatpush1.msra.mxu0 0.0
  %1414 = vmatprep.subr.mxu0 0.0
  %1415 = vmatpush1.msra.mxu0 0.0
  %1416 = vmatprep.subr.mxu0 0.0
  %1417 = vmatpush1.msra.mxu0 0.0
  %1418 = vmatprep.subr.mxu0 0.0
  %1419 = vmatpush1.msra.mxu0 0.0
  %1420 = vmatprep.subr.mxu0 0.0
  %1421 = vmatpush1.msra.mxu0 0.0
  %1422 = vmatprep.subr.mxu0 0.0
  %1423 = vmatpush1.msra.mxu0 0.0
  %1424 = vmatprep.subr.mxu0 0.0
  %1425 = vmatpush1.msra.mxu0 0.0
  %1426 = vmatprep.subr.mxu0 0.0
  %1427 = vmatpush1.msra.mxu0 0.0
  %1428 = vmatprep.subr.mxu0 0.0
  %1429 = vmatpush1.msra.mxu0 0.0
  %1430 = vmatprep.subr.mxu0 0.0
  %1431 = vmatpush1.msra.mxu0 0.0
  %1432 = vmatprep.subr.mxu0 0.0
  %1433 = vmatpush1.msra.mxu0 0.0
  %1434 = vmatprep.subr.mxu0 0.0
  %1435 = vmatpush1.msra.mxu0 0.0
  %1436 = vmatprep.subr.mxu0 0.0
  %1437 = vmatpush1.msra.mxu0 0.0
  %1438 = vmatprep.subr.mxu0 0.0
  %1439 = vmatpush1.msra.mxu0 0.0
  %1440 = vmatprep.subr.mxu0 0.0
  %1441 = vmatpush1.msra.mxu0 0.0
  %1442 = vmatprep.subr.mxu0 0.0
  %1443 = vmatpush1.msra.mxu0 0.0
  %1444 = vmatprep.mubr.f32.mxu0 0.0
  %v1445 = vand.u32 %v22, 4294901760
  %v1446 = vsub.f32 %v22, %v1445
  %v1447 = vand.u32 %v1446, 4294901760
  %1448 = vmatmul.mubr.f32.gmra.mrb[0].mxu0 %v1447
  %v1449 = vpop.f32.mrb[0].mxu0
  %v1450 = vadd.f32 %v1362, %v1449
  %v1451 = vpop.f32.mrb[0].mxu0
  %1452 = vmatprep.mubr.f32.mxu0 0.0
  %v1453 = vand.u32 %v25, 4294901760
  %v1454 = vsub.f32 %v25, %v1453
  %v1455 = vand.u32 %v1454, 4294901760
  %1456 = vmatmul.mubr.f32.gmra.mrb[0].mxu0 %v1455
  %v1457 = vpop.f32.mrb[0].mxu0
  %v1458 = vadd.f32 %v1369, %v1457
  %v1459 = vpop.f32.mrb[0].mxu0
  %1460 = vmatprep.mubr.f32.mxu0 0.0
  %v1461 = vand.u32 %v28, 4294901760
  %v1462 = vsub.f32 %v28, %v1461
  %v1463 = vand.u32 %v1462, 4294901760
  %1464 = vmatmul.mubr.f32.gmra.mrb[0].mxu0 %v1463
  %v1465 = vpop.f32.mrb[0].mxu0
  %v1466 = vadd.f32 %v1376, %v1465
  %v1467 = vpop.f32.mrb[0].mxu0
  %1468 = vdwg.mxu0
  %1469 = vmatprep.subr.mxu0 0.0
  %v1470 = vand.u32 %v1106, 4294901760
  %v1471 = vsub.f32 %v1106, %v1470
  %v1472 = vand.u32 %v1471, 4294901760
  %1473 = vmatpush1.msra.mxu0 %v1472
  %1474 = vmatprep.subr.mxu0 0.0
  %1475 = vmatpush1.msra.mxu0 0.0
  %1476 = vmatprep.subr.mxu0 0.0
  %1477 = vmatpush1.msra.mxu0 0.0
  %1478 = vmatprep.subr.mxu0 0.0
  %1479 = vmatpush1.msra.mxu0 0.0
  %1480 = vmatprep.subr.mxu0 0.0
  %1481 = vmatpush1.msra.mxu0 0.0
  %1482 = vmatprep.subr.mxu0 0.0
  %1483 = vmatpush1.msra.mxu0 0.0
  %1484 = vmatprep.subr.mxu0 0.0
  %1485 = vmatpush1.msra.mxu0 0.0
  %1486 = vmatprep.subr.mxu0 0.0
  %1487 = vmatpush1.msra.mxu0 0.0
  %1488 = vmatprep.subr.mxu0 0.0
  %1489 = vmatpush1.msra.mxu0 0.0
  %1490 = vmatprep.subr.mxu0 0.0
  %1491 = vmatpush1.msra.mxu0 0.0
  %1492 = vmatprep.subr.mxu0 0.0
  %1493 = vmatpush1.msra.mxu0 0.0
  %1494 = vmatprep.subr.mxu0 0.0
  %1495 = vmatpush1.msra.mxu0 0.0
  %1496 = vmatprep.subr.mxu0 0.0
  %1497 = vmatpush1.msra.mxu0 0.0
  %1498 = vmatprep.subr.mxu0 0.0
  %1499 = vmatpush1.msra.mxu0 0.0
  %1500 = vmatprep.subr.mxu0 0.0
  %1501 = vmatpush1.msra.mxu0 0.0
  %1502 = vmatprep.subr.mxu0 0.0
  %1503 = vmatpush1.msra.mxu0 0.0
  %1504 = vmatprep.subr.mxu0 0.0
  %1505 = vmatpush1.msra.mxu0 0.0
  %1506 = vmatprep.subr.mxu0 0.0
  %1507 = vmatpush1.msra.mxu0 0.0
  %1508 = vmatprep.subr.mxu0 0.0
  %1509 = vmatpush1.msra.mxu0 0.0
  %1510 = vmatprep.subr.mxu0 0.0
  %1511 = vmatpush1.msra.mxu0 0.0
  %1512 = vmatprep.subr.mxu0 0.0
  %1513 = vmatpush1.msra.mxu0 0.0
  %1514 = vmatprep.subr.mxu0 0.0
  %1515 = vmatpush1.msra.mxu0 0.0
  %1516 = vmatprep.subr.mxu0 0.0
  %1517 = vmatpush1.msra.mxu0 0.0
  %1518 = vmatprep.subr.mxu0 0.0
  %1519 = vmatpush1.msra.mxu0 0.0
  %1520 = vmatprep.subr.mxu0 0.0
  %1521 = vmatpush1.msra.mxu0 0.0
  %1522 = vmatprep.subr.mxu0 0.0
  %1523 = vmatpush1.msra.mxu0 0.0
  %1524 = vmatprep.subr.mxu0 0.0
  %1525 = vmatpush1.msra.mxu0 0.0
  %1526 = vmatprep.subr.mxu0 0.0
  %1527 = vmatpush1.msra.mxu0 0.0
  %1528 = vmatprep.subr.mxu0 0.0
  %1529 = vmatpush1.msra.mxu0 0.0
  %1530 = vmatprep.subr.mxu0 0.0
  %1531 = vmatpush1.msra.mxu0 0.0
  %1532 = vmatprep.subr.mxu0 0.0
  %1533 = vmatpush1.msra.mxu0 0.0
  %1534 = vmatprep.subr.mxu0 0.0
  %1535 = vmatpush1.msra.mxu0 0.0
  %1536 = vmatprep.mubr.f32.mxu0 0.0
  %v1537 = vand.u32 %v22, 4294901760
  %1538 = vmatmul.mubr.f32.gmra.mrb[0].mxu0 %v1537
  %v1539 = vpop.f32.mrb[0].mxu0
  %v1540 = vadd.f32 %v1450, %v1539
  %v1541 = vpop.f32.mrb[0].mxu0
  %1542 = vmatprep.mubr.f32.mxu0 0.0
  %v1543 = vand.u32 %v25, 4294901760
  %1544 = vmatmul.mubr.f32.gmra.mrb[0].mxu0 %v1543
  %v1545 = vpop.f32.mrb[0].mxu0
  %v1546 = vadd.f32 %v1458, %v1545
  %v1547 = vpop.f32.mrb[0].mxu0
  %1548 = vmatprep.mubr.f32.mxu0 0.0
  %v1549 = vand.u32 %v28, 4294901760
  %1550 = vmatmul.mubr.f32.gmra.mrb[0].mxu0 %v1549
  %v1551 = vpop.f32.mrb[0].mxu0
  %v1552 = vadd.f32 %v1466, %v1551
  %v1553 = vpop.f32.mrb[0].mxu0
  %1554 = vdwg.mxu0
  %1555 = vmatprep.subr.mxu0 0.0
  %v1556 = vand.u32 %v1106, 4294901760
  %1557 = vmatpush1.msra.mxu0 %v1556
  %1558 = vmatprep.subr.mxu0 0.0
  %1559 = vmatpush1.msra.mxu0 0.0
  %1560 = vmatprep.subr.mxu0 0.0
  %1561 = vmatpush1.msra.mxu0 0.0
  %1562 = vmatprep.subr.mxu0 0.0
  %1563 = vmatpush1.msra.mxu0 0.0
  %1564 = vmatprep.subr.mxu0 0.0
  %1565 = vmatpush1.msra.mxu0 0.0
  %1566 = vmatprep.subr.mxu0 0.0
  %1567 = vmatpush1.msra.mxu0 0.0
  %1568 = vmatprep.subr.mxu0 0.0
  %1569 = vmatpush1.msra.mxu0 0.0
  %1570 = vmatprep.subr.mxu0 0.0
  %1571 = vmatpush1.msra.mxu0 0.0
  %1572 = vmatprep.subr.mxu0 0.0
  %1573 = vmatpush1.msra.mxu0 0.0
  %1574 = vmatprep.subr.mxu0 0.0
  %1575 = vmatpush1.msra.mxu0 0.0
  %1576 = vmatprep.subr.mxu0 0.0
  %1577 = vmatpush1.msra.mxu0 0.0
  %1578 = vmatprep.subr.mxu0 0.0
  %1579 = vmatpush1.msra.mxu0 0.0
  %1580 = vmatprep.subr.mxu0 0.0
  %1581 = vmatpush1.msra.mxu0 0.0
  %1582 = vmatprep.subr.mxu0 0.0
  %1583 = vmatpush1.msra.mxu0 0.0
  %1584 = vmatprep.subr.mxu0 0.0
  %1585 = vmatpush1.msra.mxu0 0.0
  %1586 = vmatprep.subr.mxu0 0.0
  %1587 = vmatpush1.msra.mxu0 0.0
  %1588 = vmatprep.subr.mxu0 0.0
  %1589 = vmatpush1.msra.mxu0 0.0
  %1590 = vmatprep.subr.mxu0 0.0
  %1591 = vmatpush1.msra.mxu0 0.0
  %1592 = vmatprep.subr.mxu0 0.0
  %1593 = vmatpush1.msra.mxu0 0.0
  %1594 = vmatprep.subr.mxu0 0.0
  %1595 = vmatpush1.msra.mxu0 0.0
  %1596 = vmatprep.subr.mxu0 0.0
  %1597 = vmatpush1.msra.mxu0 0.0
  %1598 = vmatprep.subr.mxu0 0.0
  %1599 = vmatpush1.msra.mxu0 0.0
  %1600 = vmatprep.subr.mxu0 0.0
  %1601 = vmatpush1.msra.mxu0 0.0
  %1602 = vmatprep.subr.mxu0 0.0
  %1603 = vmatpush1.msra.mxu0 0.0
  %1604 = vmatprep.subr.mxu0 0.0
  %1605 = vmatpush1.msra.mxu0 0.0
  %1606 = vmatprep.subr.mxu0 0.0
  %1607 = vmatpush1.msra.mxu0 0.0
  %1608 = vmatprep.subr.mxu0 0.0
  %1609 = vmatpush1.msra.mxu0 0.0
  %1610 = vmatprep.subr.mxu0 0.0
  %1611 = vmatpush1.msra.mxu0 0.0
  %1612 = vmatprep.subr.mxu0 0.0
  %1613 = vmatpush1.msra.mxu0 0.0
  %1614 = vmatprep.subr.mxu0 0.0
  %1615 = vmatpush1.msra.mxu0 0.0
  %1616 = vmatprep.subr.mxu0 0.0
  %1617 = vmatpush1.msra.mxu0 0.0
  %1618 = vmatprep.subr.mxu0 0.0
  %1619 = vmatpush1.msra.mxu0 0.0
  %1620 = vmatprep.mubr.f32.mxu0 0.0
  %v1621 = vand.u32 %v22, 4294901760
  %1622 = vmatmul.mubr.f32.gmra.mrb[0].mxu0 %v1621
  %v1623 = vpop.f32.mrb[0].mxu0
  %v1624 = vadd.f32 %v1540, %v1623
  %v1625 = vpop.f32.mrb[0].mxu0
  %1626 = vmatprep.mubr.f32.mxu0 0.0
  %v1627 = vand.u32 %v25, 4294901760
  %1628 = vmatmul.mubr.f32.gmra.mrb[0].mxu0 %v1627
  %v1629 = vpop.f32.mrb[0].mxu0
  %v1630 = vadd.f32 %v1546, %v1629
  %v1631 = vpop.f32.mrb[0].mxu0
  %1632 = vmatprep.mubr.f32.mxu0 0.0
  %v1633 = vand.u32 %v28, 4294901760
  %1634 = vmatmul.mubr.f32.gmra.mrb[0].mxu0 %v1633
  %v1635 = vpop.f32.mrb[0].mxu0
  %v1636 = vadd.f32 %v1552, %v1635
  %v1637 = vpop.f32.mrb[0].mxu0
  %1638 = vdwg.mxu0
  %v1639 = vmul.f32 %v1624, %v1624
  %v1640 = vmul.f32 %v1630, %v1630
  %v1641 = vmul.f32 %v1636, %v1636
  %v1642 = vadd.f32 %v1102, %v1639
  %v1643 = vadd.f32 %v1103, %v1640
  %v1644 = vadd.f32 %v1104, %v1641
  %v1645 = vadd.f32 %v1642, 0.003
  %v1646 = vadd.f32 %v1643, 0.003
  %v1647 = vadd.f32 %v1644, 0.003
  %v1648 = vrsqrt.pop %v1645
  %v1649 = vmul.f32 %v1645, %v1648
  %vm1650 = vcmp.eq.f32.partialorder %v1645, inf
  %v1651 = vsel %vm1650, %v1645, %v1649
  %vm1652 = vcmp.eq.f32.partialorder %v1645, 0.0
  %v1653 = vand.u32 %v1645, 2147483648
  %v1654 = vsel %vm1652, %v1653, %v1651
  %v1655 = vrsqrt.pop %v1646
  %v1656 = vmul.f32 %v1646, %v1655
  %vm1657 = vcmp.eq.f32.partialorder %v1646, inf
  %v1658 = vsel %vm1657, %v1646, %v1656
  %vm1659 = vcmp.eq.f32.partialorder %v1646, 0.0
  %v1660 = vand.u32 %v1646, 2147483648
  %v1661 = vsel %vm1659, %v1660, %v1658
  %v1662 = vrsqrt.pop %v1647
  %v1663 = vmul.f32 %v1647, %v1662
  %vm1664 = vcmp.eq.f32.partialorder %v1647, inf
  %v1665 = vsel %vm1664, %v1647, %v1663
  %vm1666 = vcmp.eq.f32.partialorder %v1647, 0.0
  %v1667 = vand.u32 %v1647, 2147483648
  %v1668 = vsel %vm1666, %v1667, %v1665
  %v1669 = vmin.f32 %v1654, 30.0
  %v1670 = vmin.f32 %v1661, 30.0
  %v1671 = vmin.f32 %v1668, 30.0
  %v1672 = vadd.f32 %v1669, %v1670
  %v1673 = vadd.f32 %v1672, %v1671
  %v1674 = vld [vmem:[#allocation2] sm:$0xff]
  %v1675 = vadd.f32 %v1674, %v1673
  %1676 = vst [vmem:[#allocation2] sm:$0xff] %v1675
  // Predicated region
  $region14: #{_fape_loss_impl.1} parent=0 // pred_check
    %p1677 = pneg %p11
  $region15: #{_fape_loss_impl.1} parent=0 // pred_check_branch
    %1679 = sbr.rel (%p1677) target = $region17
  $region16: #{_fape_loss_impl.1} parent=0 // pred_region
    %v1680 = vld [vmem:[#allocation2] sm:$0xff]
    %1681 = vst [vmem:[%s2] sm:$0xff] %v1680
  $region17: #{_fape_loss_impl.1} parent=0 // pred_fallthru
    _
  // Predicated region
  $region18: #{_fape_loss_impl.1} parent=0 // pred_check
    _
  $region19: #{_fape_loss_impl.1} parent=0 // pred_check_branch
    %1683 = sbr.rel (0) target = $region21
  $region20: #{_fape_loss_impl.1} parent=0 // pred_region
    _
  $region21: #{_fape_loss_impl.1} parent=0 // pred_fallthru
    _
  // Predicated region
  $region22: #{_fape_loss_impl.1} parent=0 // pred_check
    _
  $region23: #{_fape_loss_impl.1} parent=0 // pred_check_branch
    %1685 = sbr.rel (0) target = $region25
  $region24: #{_fape_loss_impl.1} parent=0 // pred_region
    _
  $region25: #{_fape_loss_impl.1} parent=0 // pred_fallthru
    _

</llo_original>
